<compile_context>
chip_gen: v7x
topology: tpu7x:2x2x1
jax: 0.10.0
libtpu: 0.0.40
codegen_flags: <defaults>
</compile_context>

<pallas_src>
import numpy as np

import jax
import jax.numpy as jnp
from jax.experimental import pallas as pl
from jax.experimental.pallas import tpu as pltpu


# -----------------------------------------------------------------------------
# VMEM budgeting
# -----------------------------------------------------------------------------
def _vmem_limit_bytes():
    """Scoped-VMEM limit derived from the chip (fallback: safe 48 MiB)."""
    phys = 64 * 1024 * 1024
    try:
        info = pltpu.get_tpu_info()
        phys = int(getattr(info, "vmem_capacity_bytes", phys))
    except Exception:
        pass
    # Leave headroom for compiler-internal scratch / pipelining machinery.
    lim = int(phys * 0.75)
    return max(32 * 1024 * 1024, min(lim, 96 * 1024 * 1024))


def _pick_batch_tile(B, H, W, vmem_limit, cap=8):
    """Largest divisor of B (<= cap, <= B//2 so the 'parallel' batch axis has
    at least 2 grid steps -> both TCs on v7x) whose per-step working set fits.

    Working-set estimate per grid step (fused kernel, all scales in VMEM):
      2 inputs x 2 pipeline buffers         : 4  x bt*H*W*4 B
      Scharr temporaries (sv/dv/gx/gy/mag)  : ~8 x bt*H*W*4 B
      pyramid intermediates (geometric sum) : ~4 x bt*H*W*4 B
    """
    per_img = 16 * H * W * 4
    budget = vmem_limit // 2        # keep half free for matrices / compiler
    max_bt = max(1, min(cap, B // 2)) if B >= 2 else 1
    best = 1
    for cand in range(1, max_bt + 1):
        if B % cand == 0 and cand * per_img <= budget:
            best = cand
    return best


# -----------------------------------------------------------------------------
# In-kernel math
# -----------------------------------------------------------------------------
def _scharr_abs_mean(p, t):
    """p, t: (Bt, Hs, Ws) f32 VMEM values.  Per-image mean over the valid
    (Hs-2, Ws-2) region of | |grad p| - |grad t| | with the 3x3 Scharr
    kernels (cross-correlation, padding=0 — identical to F.conv2d).
    Returns (Bt,) f32."""
    Bt, Hs, Ws = p.shape
    Ho, Wo = Hs - 2, Ws - 2

    def grads(x):
        # Separable Scharr: vertical smoothing / difference passes, then
        # three 1-D horizontal taps (about half the MAC/slice work of the
        # fully unrolled 3x3).
        sv = 3.0 * x[:, 0:Ho, :] + 10.0 * x[:, 1:Ho + 1, :] + 3.0 * x[:, 2:Hs, :]
        dv = x[:, 0:Ho, :] - x[:, 2:Hs, :]
        gx = sv[:, :, 0:Wo] - sv[:, :, 2:Ws]
        gy = 3.0 * dv[:, :, 0:Wo] + 10.0 * dv[:, :, 1:Wo + 1] + 3.0 * dv[:, :, 2:Ws]
        return gx, gy

    gpx, gpy = grads(p)
    gtx, gty = grads(t)
    mag_p = jnp.sqrt(gpx * gpx + gpy * gpy)
    mag_t = jnp.sqrt(gtx * gtx + gty * gty)
    diff = jnp.abs(mag_p - mag_t)
    return jnp.sum(diff, axis=(1, 2)) * (1.0 / float(Ho * Wo))


def _blur_downsample(x, mh, mwT):
    """x: (Bt, Hs, Ws).  mh: (Hs//2, Hs), mwT: (Ws, Ws//2) — combined
    Gaussian-blur(pad=2, zero padding folded) + bilinear 0.5x downsample
    matrices for rows / columns.  Returns (Bt, Hs//2, Ws//2)."""
    Bt, Hs, Ws = x.shape
    Ho = mh.shape[0]
    Wo = mwT.shape[1]
    # Lane-axis (width) pass: one tall MXU matmul, M = Bt*Hs keeps the
    # systolic array full.  The reshape is layout-free when Hs % 8 == 0.
    if Hs % 8 == 0:
        col = jnp.dot(x.reshape(Bt * Hs, Ws), mwT,
                      preferred_element_type=jnp.float32)
        col = col.reshape(Bt, Hs, Wo)
    else:
        mwT_b = jnp.broadcast_to(mwT[None], (Bt, Ws, Wo))
        col = jnp.einsum('bhw,bwo->bho', x, mwT_b,
                         preferred_element_type=jnp.float32)
    # Sublane-axis (height) pass: batched matmul (broadcasting mh is tiny).
    mh_b = jnp.broadcast_to(mh[None], (Bt, Ho, Hs))
    return jnp.einsum('boh,bhw->bow', mh_b, col,
                      preferred_element_type=jnp.float32)


def _make_mage_kernel(n_scales):
    def kernel(*refs):
        # refs = (pred, targ, mh_1, mwT_1, ..., mh_{S-1}, mwT_{S-1}, loss)
        pred_ref, targ_ref = refs[0], refs[1]
        mat_refs = refs[2:-1]
        loss_ref = refs[-1]
        Bt = pred_ref.shape[0]

        p = pred_ref[...]
        t = targ_ref[...]
        total = _scharr_abs_mean(p, t)                     # scale 0 (full res)
        for s in range(1, n_scales):
            mh = mat_refs[2 * (s - 1)][...]
            mwT = mat_refs[2 * (s - 1) + 1][...]
            p = _blur_downsample(p, mh, mwT)
            t = _blur_downsample(t, mh, mwT)
            total = total + _scharr_abs_mean(p, t)
        loss_ref[...] = total.reshape(1, 1, Bt)
    return kernel


# -----------------------------------------------------------------------------
# Blur + downsample matrices (zero padding of F.conv2d(padding=2) folded in)
# -----------------------------------------------------------------------------
def _blur_downsample_matrix(n):
    """(n//2, n) matrix = (2x2-average bilinear downsample) @ (banded 1-D
    Gaussian [1,4,6,4,1]/16) with the pad=2 zero padding folded in."""
    g1 = np.array([1.0, 4.0, 6.0, 4.0, 1.0], np.float32) / 16.0
    A = np.zeros((n, n + 4), np.float32)
    for i in range(n):
        A[i, i:i + 5] = g1
    D = np.zeros((n // 2, n), np.float32)
    for i in range(n // 2):
        D[i, 2 * i] = 0.5
        D[i, 2 * i + 1] = 0.5
    M = (D @ A)[:, 2:-2]          # drop zero-pad columns: (n//2, n)
    return jnp.asarray(M)


# -----------------------------------------------------------------------------
# Full MAGE loss (matches MAGELoss.forward semantics, forward pass only)
# -----------------------------------------------------------------------------
def mage_loss(prediction, target, n_scales):
    """prediction, target: (B, H, W) f32 -> scalar f32."""
    B, H, W = prediction.shape

    # Validate that every pyramid level is big enough for the 3x3 Scharr.
    h, w = H, W
    for _ in range(1, n_scales):
        assert h % 2 == 0 and w % 2 == 0, "even spatial dims required"
        h //= 2
        w //= 2
        assert h >= 3 and w >= 3, "downsampled image too small for 3x3 Scharr"

    vmem_limit = _vmem_limit_bytes()
    bt = _pick_batch_tile(B, H, W, vmem_limit)
    nb = B // bt

    # Per-scale combined blur+downsample matrices (constants).
    mats = []
    h, w = H, W
    for _ in range(1, n_scales):
        mats.append(_blur_downsample_matrix(h))        # (h//2, h)
        mats.append(_blur_downsample_matrix(w).T)      # (w, w//2)
        h //= 2
        w //= 2

    in_specs = [
        pl.BlockSpec((bt, H, W), lambda b: (b, 0, 0)),
        pl.BlockSpec((bt, H, W), lambda b: (b, 0, 0)),
    ]
    for m in mats:
        in_specs.append(pl.BlockSpec(m.shape, lambda b: (0, 0)))

    losses = pl.pallas_call(
        _make_mage_kernel(n_scales),
        out_shape=jax.ShapeDtypeStruct((nb, 1, bt), jnp.float32),
        grid=(nb,),
        in_specs=in_specs,
        out_specs=pl.BlockSpec((1, 1, bt), lambda b: (b, 0, 0)),
        compiler_params=pltpu.CompilerParams(
            dimension_semantics=("parallel",),
            vmem_limit_bytes=vmem_limit,
        ),
    )(prediction, target, *mats)

    total = losses.reshape(B)                 # per-image loss summed over scales
    return jnp.mean(total / n_scales)


if __name__ == "__main__":
    B, H, W = 2, 32, 32
    n_scales = 3

    key = jax.random.PRNGKey(0)
    k1, k2 = jax.random.split(key)
    prediction = jax.random.normal(k1, (B, H, W), dtype=jnp.float32)
    target = jax.random.normal(k2, (B, H, W), dtype=jnp.float32)

    loss = jax.jit(mage_loss, static_argnums=2)(prediction, target, n_scales)
    jax.block_until_ready(loss)
    print("KERNEL_OK")
</pallas_src>

<mosaic_0001>
module attributes {stable_mosaic.version = 11 : i64} {
  func.func @kernel(%arg0: i32, %arg1: memref<1x32x32xf32, #tpu.memory_space<vmem>>, %arg2: memref<1x32x32xf32, #tpu.memory_space<vmem>>, %arg3: memref<16x32xf32, #tpu.memory_space<vmem>>, %arg4: memref<32x16xf32, #tpu.memory_space<vmem>>, %arg5: memref<8x16xf32, #tpu.memory_space<vmem>>, %arg6: memref<16x8xf32, #tpu.memory_space<vmem>>, %arg7: memref<1x1x1xf32, #tpu.memory_space<vmem>>) attributes {dimension_semantics = [#tpu.dimension_semantics<parallel>], iteration_bounds = array<i64: 2>, scalar_prefetch = 0 : i64, scratch_operands = 0 : i64, tpu.core_type = #tpu.core_type<tc>, window_params = [{transform_indices = @transform_0, window_bounds = array<i64: 1, 32, 32>}, {transform_indices = @transform_1, window_bounds = array<i64: 1, 32, 32>}, {pipeline_mode = #tpu.pipeline_mode<synchronous>, transform_indices = @transform_2, window_bounds = array<i64: 16, 32>}, {pipeline_mode = #tpu.pipeline_mode<synchronous>, transform_indices = @transform_3, window_bounds = array<i64: 32, 16>}, {pipeline_mode = #tpu.pipeline_mode<synchronous>, transform_indices = @transform_4, window_bounds = array<i64: 8, 16>}, {pipeline_mode = #tpu.pipeline_mode<synchronous>, transform_indices = @transform_5, window_bounds = array<i64: 16, 8>}, {transform_indices = @transform_6, window_bounds = array<i64: 1, 1, 1>}]} {
    %c0 = arith.constant 0 : index
    %c0_0 = arith.constant 0 : index
    %c0_1 = arith.constant 0 : index
    %0 = vector.load %arg1[%c0, %c0_0, %c0_1] : memref<1x32x32xf32, #tpu.memory_space<vmem>>, vector<1x32x32xf32>
    %c0_2 = arith.constant 0 : index
    %c0_3 = arith.constant 0 : index
    %c0_4 = arith.constant 0 : index
    %1 = vector.load %arg2[%c0_2, %c0_3, %c0_4] : memref<1x32x32xf32, #tpu.memory_space<vmem>>, vector<1x32x32xf32>
    %2 = vector.extract_strided_slice %0 {offsets = [0, 0, 0], sizes = [1, 30, 32], strides = [1, 1, 1]} : vector<1x32x32xf32> to vector<1x30x32xf32>
    %cst = arith.constant 3.000000e+00 : f32
    %3 = vector.broadcast %cst : f32 to vector<1x30x32xf32>
    %4 = arith.mulf %3, %2 : vector<1x30x32xf32>
    %5 = vector.extract_strided_slice %0 {offsets = [0, 1, 0], sizes = [1, 30, 32], strides = [1, 1, 1]} : vector<1x32x32xf32> to vector<1x30x32xf32>
    %cst_5 = arith.constant 1.000000e+01 : f32
    %6 = vector.broadcast %cst_5 : f32 to vector<1x30x32xf32>
    %7 = arith.mulf %6, %5 : vector<1x30x32xf32>
    %8 = arith.addf %4, %7 : vector<1x30x32xf32>
    %9 = vector.extract_strided_slice %0 {offsets = [0, 2, 0], sizes = [1, 30, 32], strides = [1, 1, 1]} : vector<1x32x32xf32> to vector<1x30x32xf32>
    %cst_6 = arith.constant 3.000000e+00 : f32
    %10 = vector.broadcast %cst_6 : f32 to vector<1x30x32xf32>
    %11 = arith.mulf %10, %9 : vector<1x30x32xf32>
    %12 = arith.addf %8, %11 : vector<1x30x32xf32>
    %13 = vector.extract_strided_slice %0 {offsets = [0, 0, 0], sizes = [1, 30, 32], strides = [1, 1, 1]} : vector<1x32x32xf32> to vector<1x30x32xf32>
    %14 = vector.extract_strided_slice %0 {offsets = [0, 2, 0], sizes = [1, 30, 32], strides = [1, 1, 1]} : vector<1x32x32xf32> to vector<1x30x32xf32>
    %15 = arith.subf %13, %14 : vector<1x30x32xf32>
    %16 = vector.extract_strided_slice %12 {offsets = [0, 0, 0], sizes = [1, 30, 30], strides = [1, 1, 1]} : vector<1x30x32xf32> to vector<1x30x30xf32>
    %17 = vector.extract_strided_slice %12 {offsets = [0, 0, 2], sizes = [1, 30, 30], strides = [1, 1, 1]} : vector<1x30x32xf32> to vector<1x30x30xf32>
    %18 = arith.subf %16, %17 : vector<1x30x30xf32>
    %19 = vector.extract_strided_slice %15 {offsets = [0, 0, 0], sizes = [1, 30, 30], strides = [1, 1, 1]} : vector<1x30x32xf32> to vector<1x30x30xf32>
    %cst_7 = arith.constant 3.000000e+00 : f32
    %20 = vector.broadcast %cst_7 : f32 to vector<1x30x30xf32>
    %21 = arith.mulf %20, %19 : vector<1x30x30xf32>
    %22 = vector.extract_strided_slice %15 {offsets = [0, 0, 1], sizes = [1, 30, 30], strides = [1, 1, 1]} : vector<1x30x32xf32> to vector<1x30x30xf32>
    %cst_8 = arith.constant 1.000000e+01 : f32
    %23 = vector.broadcast %cst_8 : f32 to vector<1x30x30xf32>
    %24 = arith.mulf %23, %22 : vector<1x30x30xf32>
    %25 = arith.addf %21, %24 : vector<1x30x30xf32>
    %26 = vector.extract_strided_slice %15 {offsets = [0, 0, 2], sizes = [1, 30, 30], strides = [1, 1, 1]} : vector<1x30x32xf32> to vector<1x30x30xf32>
    %cst_9 = arith.constant 3.000000e+00 : f32
    %27 = vector.broadcast %cst_9 : f32 to vector<1x30x30xf32>
    %28 = arith.mulf %27, %26 : vector<1x30x30xf32>
    %29 = arith.addf %25, %28 : vector<1x30x30xf32>
    %30 = vector.extract_strided_slice %1 {offsets = [0, 0, 0], sizes = [1, 30, 32], strides = [1, 1, 1]} : vector<1x32x32xf32> to vector<1x30x32xf32>
    %cst_10 = arith.constant 3.000000e+00 : f32
    %31 = vector.broadcast %cst_10 : f32 to vector<1x30x32xf32>
    %32 = arith.mulf %31, %30 : vector<1x30x32xf32>
    %33 = vector.extract_strided_slice %1 {offsets = [0, 1, 0], sizes = [1, 30, 32], strides = [1, 1, 1]} : vector<1x32x32xf32> to vector<1x30x32xf32>
    %cst_11 = arith.constant 1.000000e+01 : f32
    %34 = vector.broadcast %cst_11 : f32 to vector<1x30x32xf32>
    %35 = arith.mulf %34, %33 : vector<1x30x32xf32>
    %36 = arith.addf %32, %35 : vector<1x30x32xf32>
    %37 = vector.extract_strided_slice %1 {offsets = [0, 2, 0], sizes = [1, 30, 32], strides = [1, 1, 1]} : vector<1x32x32xf32> to vector<1x30x32xf32>
    %cst_12 = arith.constant 3.000000e+00 : f32
    %38 = vector.broadcast %cst_12 : f32 to vector<1x30x32xf32>
    %39 = arith.mulf %38, %37 : vector<1x30x32xf32>
    %40 = arith.addf %36, %39 : vector<1x30x32xf32>
    %41 = vector.extract_strided_slice %1 {offsets = [0, 0, 0], sizes = [1, 30, 32], strides = [1, 1, 1]} : vector<1x32x32xf32> to vector<1x30x32xf32>
    %42 = vector.extract_strided_slice %1 {offsets = [0, 2, 0], sizes = [1, 30, 32], strides = [1, 1, 1]} : vector<1x32x32xf32> to vector<1x30x32xf32>
    %43 = arith.subf %41, %42 : vector<1x30x32xf32>
    %44 = vector.extract_strided_slice %40 {offsets = [0, 0, 0], sizes = [1, 30, 30], strides = [1, 1, 1]} : vector<1x30x32xf32> to vector<1x30x30xf32>
    %45 = vector.extract_strided_slice %40 {offsets = [0, 0, 2], sizes = [1, 30, 30], strides = [1, 1, 1]} : vector<1x30x32xf32> to vector<1x30x30xf32>
    %46 = arith.subf %44, %45 : vector<1x30x30xf32>
    %47 = vector.extract_strided_slice %43 {offsets = [0, 0, 0], sizes = [1, 30, 30], strides = [1, 1, 1]} : vector<1x30x32xf32> to vector<1x30x30xf32>
    %cst_13 = arith.constant 3.000000e+00 : f32
    %48 = vector.broadcast %cst_13 : f32 to vector<1x30x30xf32>
    %49 = arith.mulf %48, %47 : vector<1x30x30xf32>
    %50 = vector.extract_strided_slice %43 {offsets = [0, 0, 1], sizes = [1, 30, 30], strides = [1, 1, 1]} : vector<1x30x32xf32> to vector<1x30x30xf32>
    %cst_14 = arith.constant 1.000000e+01 : f32
    %51 = vector.broadcast %cst_14 : f32 to vector<1x30x30xf32>
    %52 = arith.mulf %51, %50 : vector<1x30x30xf32>
    %53 = arith.addf %49, %52 : vector<1x30x30xf32>
    %54 = vector.extract_strided_slice %43 {offsets = [0, 0, 2], sizes = [1, 30, 30], strides = [1, 1, 1]} : vector<1x30x32xf32> to vector<1x30x30xf32>
    %cst_15 = arith.constant 3.000000e+00 : f32
    %55 = vector.broadcast %cst_15 : f32 to vector<1x30x30xf32>
    %56 = arith.mulf %55, %54 : vector<1x30x30xf32>
    %57 = arith.addf %53, %56 : vector<1x30x30xf32>
    %58 = arith.mulf %18, %18 : vector<1x30x30xf32>
    %59 = arith.mulf %29, %29 : vector<1x30x30xf32>
    %60 = arith.addf %58, %59 : vector<1x30x30xf32>
    %61 = math.sqrt %60 : vector<1x30x30xf32>
    %62 = arith.mulf %46, %46 : vector<1x30x30xf32>
    %63 = arith.mulf %57, %57 : vector<1x30x30xf32>
    %64 = arith.addf %62, %63 : vector<1x30x30xf32>
    %65 = math.sqrt %64 : vector<1x30x30xf32>
    %66 = arith.subf %61, %65 : vector<1x30x30xf32>
    %67 = math.absf %66 : vector<1x30x30xf32>
    %cst_16 = arith.constant dense<0.000000e+00> : vector<1xf32>
    %68 = vector.multi_reduction <add>, %67, %cst_16 [1, 2] : vector<1x30x30xf32> to vector<1xf32>
    %cst_17 = arith.constant 0.00111111114 : f32
    %69 = vector.broadcast %cst_17 : f32 to vector<1xf32>
    %70 = arith.mulf %68, %69 : vector<1xf32>
    %c0_18 = arith.constant 0 : index
    %c0_19 = arith.constant 0 : index
    %71 = vector.load %arg3[%c0_18, %c0_19] : memref<16x32xf32, #tpu.memory_space<vmem>>, vector<16x32xf32>
    %c0_20 = arith.constant 0 : index
    %c0_21 = arith.constant 0 : index
    %72 = vector.load %arg4[%c0_20, %c0_21] : memref<32x16xf32, #tpu.memory_space<vmem>>, vector<32x16xf32>
    %73 = vector.shape_cast %0 : vector<1x32x32xf32> to vector<32x32xf32>
    %cst_22 = arith.constant dense<0.000000e+00> : vector<32x16xf32>
    %74 = tpu.matmul %73, %72, %cst_22 {dimension_numbers = #tpu.dot_dimension_numbers<[1], [0], [0], [1], [0, 0, 1, 1], [], []>} : vector<32x32xf32>, vector<32x16xf32>, vector<32x16xf32> -> vector<32x16xf32>
    %75 = vector.shape_cast %74 : vector<32x16xf32> to vector<1x32x16xf32>
    %76 = vector.shape_cast %71 : vector<16x32xf32> to vector<1x16x32xf32>
    "tpu.trace_start"() <{level = 10 : i32, message = "boh,bhw->bow"}> : () -> ()
    %cst_23 = arith.constant dense<0.000000e+00> : vector<1x16x16xf32>
    %77 = tpu.matmul %76, %75, %cst_23 {dimension_numbers = #tpu.dot_dimension_numbers<[2], [1], [1], [2], [0, 0, 0, 1, 1, 2], [0], [0]>} : vector<1x16x32xf32>, vector<1x32x16xf32>, vector<1x16x16xf32> -> vector<1x16x16xf32>
    "tpu.trace_stop"() : () -> ()
    %78 = vector.shape_cast %1 : vector<1x32x32xf32> to vector<32x32xf32>
    %cst_24 = arith.constant dense<0.000000e+00> : vector<32x16xf32>
    %79 = tpu.matmul %78, %72, %cst_24 {dimension_numbers = #tpu.dot_dimension_numbers<[1], [0], [0], [1], [0, 0, 1, 1], [], []>} : vector<32x32xf32>, vector<32x16xf32>, vector<32x16xf32> -> vector<32x16xf32>
    %80 = vector.shape_cast %79 : vector<32x16xf32> to vector<1x32x16xf32>
    %81 = vector.shape_cast %71 : vector<16x32xf32> to vector<1x16x32xf32>
    "tpu.trace_start"() <{level = 10 : i32, message = "boh,bhw->bow"}> : () -> ()
    %cst_25 = arith.constant dense<0.000000e+00> : vector<1x16x16xf32>
    %82 = tpu.matmul %81, %80, %cst_25 {dimension_numbers = #tpu.dot_dimension_numbers<[2], [1], [1], [2], [0, 0, 0, 1, 1, 2], [0], [0]>} : vector<1x16x32xf32>, vector<1x32x16xf32>, vector<1x16x16xf32> -> vector<1x16x16xf32>
    "tpu.trace_stop"() : () -> ()
    %83 = vector.extract_strided_slice %77 {offsets = [0, 0, 0], sizes = [1, 14, 16], strides = [1, 1, 1]} : vector<1x16x16xf32> to vector<1x14x16xf32>
    %cst_26 = arith.constant 3.000000e+00 : f32
    %84 = vector.broadcast %cst_26 : f32 to vector<1x14x16xf32>
    %85 = arith.mulf %84, %83 : vector<1x14x16xf32>
    %86 = vector.extract_strided_slice %77 {offsets = [0, 1, 0], sizes = [1, 14, 16], strides = [1, 1, 1]} : vector<1x16x16xf32> to vector<1x14x16xf32>
    %cst_27 = arith.constant 1.000000e+01 : f32
    %87 = vector.broadcast %cst_27 : f32 to vector<1x14x16xf32>
    %88 = arith.mulf %87, %86 : vector<1x14x16xf32>
    %89 = arith.addf %85, %88 : vector<1x14x16xf32>
    %90 = vector.extract_strided_slice %77 {offsets = [0, 2, 0], sizes = [1, 14, 16], strides = [1, 1, 1]} : vector<1x16x16xf32> to vector<1x14x16xf32>
    %cst_28 = arith.constant 3.000000e+00 : f32
    %91 = vector.broadcast %cst_28 : f32 to vector<1x14x16xf32>
    %92 = arith.mulf %91, %90 : vector<1x14x16xf32>
    %93 = arith.addf %89, %92 : vector<1x14x16xf32>
    %94 = vector.extract_strided_slice %77 {offsets = [0, 0, 0], sizes = [1, 14, 16], strides = [1, 1, 1]} : vector<1x16x16xf32> to vector<1x14x16xf32>
    %95 = vector.extract_strided_slice %77 {offsets = [0, 2, 0], sizes = [1, 14, 16], strides = [1, 1, 1]} : vector<1x16x16xf32> to vector<1x14x16xf32>
    %96 = arith.subf %94, %95 : vector<1x14x16xf32>
    %97 = vector.extract_strided_slice %93 {offsets = [0, 0, 0], sizes = [1, 14, 14], strides = [1, 1, 1]} : vector<1x14x16xf32> to vector<1x14x14xf32>
    %98 = vector.extract_strided_slice %93 {offsets = [0, 0, 2], sizes = [1, 14, 14], strides = [1, 1, 1]} : vector<1x14x16xf32> to vector<1x14x14xf32>
    %99 = arith.subf %97, %98 : vector<1x14x14xf32>
    %100 = vector.extract_strided_slice %96 {offsets = [0, 0, 0], sizes = [1, 14, 14], strides = [1, 1, 1]} : vector<1x14x16xf32> to vector<1x14x14xf32>
    %cst_29 = arith.constant 3.000000e+00 : f32
    %101 = vector.broadcast %cst_29 : f32 to vector<1x14x14xf32>
    %102 = arith.mulf %101, %100 : vector<1x14x14xf32>
    %103 = vector.extract_strided_slice %96 {offsets = [0, 0, 1], sizes = [1, 14, 14], strides = [1, 1, 1]} : vector<1x14x16xf32> to vector<1x14x14xf32>
    %cst_30 = arith.constant 1.000000e+01 : f32
    %104 = vector.broadcast %cst_30 : f32 to vector<1x14x14xf32>
    %105 = arith.mulf %104, %103 : vector<1x14x14xf32>
    %106 = arith.addf %102, %105 : vector<1x14x14xf32>
    %107 = vector.extract_strided_slice %96 {offsets = [0, 0, 2], sizes = [1, 14, 14], strides = [1, 1, 1]} : vector<1x14x16xf32> to vector<1x14x14xf32>
    %cst_31 = arith.constant 3.000000e+00 : f32
    %108 = vector.broadcast %cst_31 : f32 to vector<1x14x14xf32>
    %109 = arith.mulf %108, %107 : vector<1x14x14xf32>
    %110 = arith.addf %106, %109 : vector<1x14x14xf32>
    %111 = vector.extract_strided_slice %82 {offsets = [0, 0, 0], sizes = [1, 14, 16], strides = [1, 1, 1]} : vector<1x16x16xf32> to vector<1x14x16xf32>
    %cst_32 = arith.constant 3.000000e+00 : f32
    %112 = vector.broadcast %cst_32 : f32 to vector<1x14x16xf32>
    %113 = arith.mulf %112, %111 : vector<1x14x16xf32>
    %114 = vector.extract_strided_slice %82 {offsets = [0, 1, 0], sizes = [1, 14, 16], strides = [1, 1, 1]} : vector<1x16x16xf32> to vector<1x14x16xf32>
    %cst_33 = arith.constant 1.000000e+01 : f32
    %115 = vector.broadcast %cst_33 : f32 to vector<1x14x16xf32>
    %116 = arith.mulf %115, %114 : vector<1x14x16xf32>
    %117 = arith.addf %113, %116 : vector<1x14x16xf32>
    %118 = vector.extract_strided_slice %82 {offsets = [0, 2, 0], sizes = [1, 14, 16], strides = [1, 1, 1]} : vector<1x16x16xf32> to vector<1x14x16xf32>
    %cst_34 = arith.constant 3.000000e+00 : f32
    %119 = vector.broadcast %cst_34 : f32 to vector<1x14x16xf32>
    %120 = arith.mulf %119, %118 : vector<1x14x16xf32>
    %121 = arith.addf %117, %120 : vector<1x14x16xf32>
    %122 = vector.extract_strided_slice %82 {offsets = [0, 0, 0], sizes = [1, 14, 16], strides = [1, 1, 1]} : vector<1x16x16xf32> to vector<1x14x16xf32>
    %123 = vector.extract_strided_slice %82 {offsets = [0, 2, 0], sizes = [1, 14, 16], strides = [1, 1, 1]} : vector<1x16x16xf32> to vector<1x14x16xf32>
    %124 = arith.subf %122, %123 : vector<1x14x16xf32>
    %125 = vector.extract_strided_slice %121 {offsets = [0, 0, 0], sizes = [1, 14, 14], strides = [1, 1, 1]} : vector<1x14x16xf32> to vector<1x14x14xf32>
    %126 = vector.extract_strided_slice %121 {offsets = [0, 0, 2], sizes = [1, 14, 14], strides = [1, 1, 1]} : vector<1x14x16xf32> to vector<1x14x14xf32>
    %127 = arith.subf %125, %126 : vector<1x14x14xf32>
    %128 = vector.extract_strided_slice %124 {offsets = [0, 0, 0], sizes = [1, 14, 14], strides = [1, 1, 1]} : vector<1x14x16xf32> to vector<1x14x14xf32>
    %cst_35 = arith.constant 3.000000e+00 : f32
    %129 = vector.broadcast %cst_35 : f32 to vector<1x14x14xf32>
    %130 = arith.mulf %129, %128 : vector<1x14x14xf32>
    %131 = vector.extract_strided_slice %124 {offsets = [0, 0, 1], sizes = [1, 14, 14], strides = [1, 1, 1]} : vector<1x14x16xf32> to vector<1x14x14xf32>
    %cst_36 = arith.constant 1.000000e+01 : f32
    %132 = vector.broadcast %cst_36 : f32 to vector<1x14x14xf32>
    %133 = arith.mulf %132, %131 : vector<1x14x14xf32>
    %134 = arith.addf %130, %133 : vector<1x14x14xf32>
    %135 = vector.extract_strided_slice %124 {offsets = [0, 0, 2], sizes = [1, 14, 14], strides = [1, 1, 1]} : vector<1x14x16xf32> to vector<1x14x14xf32>
    %cst_37 = arith.constant 3.000000e+00 : f32
    %136 = vector.broadcast %cst_37 : f32 to vector<1x14x14xf32>
    %137 = arith.mulf %136, %135 : vector<1x14x14xf32>
    %138 = arith.addf %134, %137 : vector<1x14x14xf32>
    %139 = arith.mulf %99, %99 : vector<1x14x14xf32>
    %140 = arith.mulf %110, %110 : vector<1x14x14xf32>
    %141 = arith.addf %139, %140 : vector<1x14x14xf32>
    %142 = math.sqrt %141 : vector<1x14x14xf32>
    %143 = arith.mulf %127, %127 : vector<1x14x14xf32>
    %144 = arith.mulf %138, %138 : vector<1x14x14xf32>
    %145 = arith.addf %143, %144 : vector<1x14x14xf32>
    %146 = math.sqrt %145 : vector<1x14x14xf32>
    %147 = arith.subf %142, %146 : vector<1x14x14xf32>
    %148 = math.absf %147 : vector<1x14x14xf32>
    %cst_38 = arith.constant dense<0.000000e+00> : vector<1xf32>
    %149 = vector.multi_reduction <add>, %148, %cst_38 [1, 2] : vector<1x14x14xf32> to vector<1xf32>
    %cst_39 = arith.constant 0.00510204071 : f32
    %150 = vector.broadcast %cst_39 : f32 to vector<1xf32>
    %151 = arith.mulf %149, %150 : vector<1xf32>
    %152 = arith.addf %70, %151 : vector<1xf32>
    %c0_40 = arith.constant 0 : index
    %c0_41 = arith.constant 0 : index
    %153 = vector.load %arg5[%c0_40, %c0_41] : memref<8x16xf32, #tpu.memory_space<vmem>>, vector<8x16xf32>
    %c0_42 = arith.constant 0 : index
    %c0_43 = arith.constant 0 : index
    %154 = vector.load %arg6[%c0_42, %c0_43] : memref<16x8xf32, #tpu.memory_space<vmem>>, vector<16x8xf32>
    %155 = vector.shape_cast %77 : vector<1x16x16xf32> to vector<16x16xf32>
    %cst_44 = arith.constant dense<0.000000e+00> : vector<16x8xf32>
    %156 = tpu.matmul %155, %154, %cst_44 {dimension_numbers = #tpu.dot_dimension_numbers<[1], [0], [0], [1], [0, 0, 1, 1], [], []>} : vector<16x16xf32>, vector<16x8xf32>, vector<16x8xf32> -> vector<16x8xf32>
    %157 = vector.shape_cast %156 : vector<16x8xf32> to vector<1x16x8xf32>
    %158 = vector.shape_cast %153 : vector<8x16xf32> to vector<1x8x16xf32>
    "tpu.trace_start"() <{level = 10 : i32, message = "boh,bhw->bow"}> : () -> ()
    %cst_45 = arith.constant dense<0.000000e+00> : vector<1x8x8xf32>
    %159 = tpu.matmul %158, %157, %cst_45 {dimension_numbers = #tpu.dot_dimension_numbers<[2], [1], [1], [2], [0, 0, 0, 1, 1, 2], [0], [0]>} : vector<1x8x16xf32>, vector<1x16x8xf32>, vector<1x8x8xf32> -> vector<1x8x8xf32>
    "tpu.trace_stop"() : () -> ()
    %160 = vector.shape_cast %82 : vector<1x16x16xf32> to vector<16x16xf32>
    %cst_46 = arith.constant dense<0.000000e+00> : vector<16x8xf32>
    %161 = tpu.matmul %160, %154, %cst_46 {dimension_numbers = #tpu.dot_dimension_numbers<[1], [0], [0], [1], [0, 0, 1, 1], [], []>} : vector<16x16xf32>, vector<16x8xf32>, vector<16x8xf32> -> vector<16x8xf32>
    %162 = vector.shape_cast %161 : vector<16x8xf32> to vector<1x16x8xf32>
    %163 = vector.shape_cast %153 : vector<8x16xf32> to vector<1x8x16xf32>
    "tpu.trace_start"() <{level = 10 : i32, message = "boh,bhw->bow"}> : () -> ()
    %cst_47 = arith.constant dense<0.000000e+00> : vector<1x8x8xf32>
    %164 = tpu.matmul %163, %162, %cst_47 {dimension_numbers = #tpu.dot_dimension_numbers<[2], [1], [1], [2], [0, 0, 0, 1, 1, 2], [0], [0]>} : vector<1x8x16xf32>, vector<1x16x8xf32>, vector<1x8x8xf32> -> vector<1x8x8xf32>
    "tpu.trace_stop"() : () -> ()
    %165 = vector.extract_strided_slice %159 {offsets = [0, 0, 0], sizes = [1, 6, 8], strides = [1, 1, 1]} : vector<1x8x8xf32> to vector<1x6x8xf32>
    %cst_48 = arith.constant 3.000000e+00 : f32
    %166 = vector.broadcast %cst_48 : f32 to vector<1x6x8xf32>
    %167 = arith.mulf %166, %165 : vector<1x6x8xf32>
    %168 = vector.extract_strided_slice %159 {offsets = [0, 1, 0], sizes = [1, 6, 8], strides = [1, 1, 1]} : vector<1x8x8xf32> to vector<1x6x8xf32>
    %cst_49 = arith.constant 1.000000e+01 : f32
    %169 = vector.broadcast %cst_49 : f32 to vector<1x6x8xf32>
    %170 = arith.mulf %169, %168 : vector<1x6x8xf32>
    %171 = arith.addf %167, %170 : vector<1x6x8xf32>
    %172 = vector.extract_strided_slice %159 {offsets = [0, 2, 0], sizes = [1, 6, 8], strides = [1, 1, 1]} : vector<1x8x8xf32> to vector<1x6x8xf32>
    %cst_50 = arith.constant 3.000000e+00 : f32
    %173 = vector.broadcast %cst_50 : f32 to vector<1x6x8xf32>
    %174 = arith.mulf %173, %172 : vector<1x6x8xf32>
    %175 = arith.addf %171, %174 : vector<1x6x8xf32>
    %176 = vector.extract_strided_slice %159 {offsets = [0, 0, 0], sizes = [1, 6, 8], strides = [1, 1, 1]} : vector<1x8x8xf32> to vector<1x6x8xf32>
    %177 = vector.extract_strided_slice %159 {offsets = [0, 2, 0], sizes = [1, 6, 8], strides = [1, 1, 1]} : vector<1x8x8xf32> to vector<1x6x8xf32>
    %178 = arith.subf %176, %177 : vector<1x6x8xf32>
    %179 = vector.extract_strided_slice %175 {offsets = [0, 0, 0], sizes = [1, 6, 6], strides = [1, 1, 1]} : vector<1x6x8xf32> to vector<1x6x6xf32>
    %180 = vector.extract_strided_slice %175 {offsets = [0, 0, 2], sizes = [1, 6, 6], strides = [1, 1, 1]} : vector<1x6x8xf32> to vector<1x6x6xf32>
    %181 = arith.subf %179, %180 : vector<1x6x6xf32>
    %182 = vector.extract_strided_slice %178 {offsets = [0, 0, 0], sizes = [1, 6, 6], strides = [1, 1, 1]} : vector<1x6x8xf32> to vector<1x6x6xf32>
    %cst_51 = arith.constant 3.000000e+00 : f32
    %183 = vector.broadcast %cst_51 : f32 to vector<1x6x6xf32>
    %184 = arith.mulf %183, %182 : vector<1x6x6xf32>
    %185 = vector.extract_strided_slice %178 {offsets = [0, 0, 1], sizes = [1, 6, 6], strides = [1, 1, 1]} : vector<1x6x8xf32> to vector<1x6x6xf32>
    %cst_52 = arith.constant 1.000000e+01 : f32
    %186 = vector.broadcast %cst_52 : f32 to vector<1x6x6xf32>
    %187 = arith.mulf %186, %185 : vector<1x6x6xf32>
    %188 = arith.addf %184, %187 : vector<1x6x6xf32>
    %189 = vector.extract_strided_slice %178 {offsets = [0, 0, 2], sizes = [1, 6, 6], strides = [1, 1, 1]} : vector<1x6x8xf32> to vector<1x6x6xf32>
    %cst_53 = arith.constant 3.000000e+00 : f32
    %190 = vector.broadcast %cst_53 : f32 to vector<1x6x6xf32>
    %191 = arith.mulf %190, %189 : vector<1x6x6xf32>
    %192 = arith.addf %188, %191 : vector<1x6x6xf32>
    %193 = vector.extract_strided_slice %164 {offsets = [0, 0, 0], sizes = [1, 6, 8], strides = [1, 1, 1]} : vector<1x8x8xf32> to vector<1x6x8xf32>
    %cst_54 = arith.constant 3.000000e+00 : f32
    %194 = vector.broadcast %cst_54 : f32 to vector<1x6x8xf32>
    %195 = arith.mulf %194, %193 : vector<1x6x8xf32>
    %196 = vector.extract_strided_slice %164 {offsets = [0, 1, 0], sizes = [1, 6, 8], strides = [1, 1, 1]} : vector<1x8x8xf32> to vector<1x6x8xf32>
    %cst_55 = arith.constant 1.000000e+01 : f32
    %197 = vector.broadcast %cst_55 : f32 to vector<1x6x8xf32>
    %198 = arith.mulf %197, %196 : vector<1x6x8xf32>
    %199 = arith.addf %195, %198 : vector<1x6x8xf32>
    %200 = vector.extract_strided_slice %164 {offsets = [0, 2, 0], sizes = [1, 6, 8], strides = [1, 1, 1]} : vector<1x8x8xf32> to vector<1x6x8xf32>
    %cst_56 = arith.constant 3.000000e+00 : f32
    %201 = vector.broadcast %cst_56 : f32 to vector<1x6x8xf32>
    %202 = arith.mulf %201, %200 : vector<1x6x8xf32>
    %203 = arith.addf %199, %202 : vector<1x6x8xf32>
    %204 = vector.extract_strided_slice %164 {offsets = [0, 0, 0], sizes = [1, 6, 8], strides = [1, 1, 1]} : vector<1x8x8xf32> to vector<1x6x8xf32>
    %205 = vector.extract_strided_slice %164 {offsets = [0, 2, 0], sizes = [1, 6, 8], strides = [1, 1, 1]} : vector<1x8x8xf32> to vector<1x6x8xf32>
    %206 = arith.subf %204, %205 : vector<1x6x8xf32>
    %207 = vector.extract_strided_slice %203 {offsets = [0, 0, 0], sizes = [1, 6, 6], strides = [1, 1, 1]} : vector<1x6x8xf32> to vector<1x6x6xf32>
    %208 = vector.extract_strided_slice %203 {offsets = [0, 0, 2], sizes = [1, 6, 6], strides = [1, 1, 1]} : vector<1x6x8xf32> to vector<1x6x6xf32>
    %209 = arith.subf %207, %208 : vector<1x6x6xf32>
    %210 = vector.extract_strided_slice %206 {offsets = [0, 0, 0], sizes = [1, 6, 6], strides = [1, 1, 1]} : vector<1x6x8xf32> to vector<1x6x6xf32>
    %cst_57 = arith.constant 3.000000e+00 : f32
    %211 = vector.broadcast %cst_57 : f32 to vector<1x6x6xf32>
    %212 = arith.mulf %211, %210 : vector<1x6x6xf32>
    %213 = vector.extract_strided_slice %206 {offsets = [0, 0, 1], sizes = [1, 6, 6], strides = [1, 1, 1]} : vector<1x6x8xf32> to vector<1x6x6xf32>
    %cst_58 = arith.constant 1.000000e+01 : f32
    %214 = vector.broadcast %cst_58 : f32 to vector<1x6x6xf32>
    %215 = arith.mulf %214, %213 : vector<1x6x6xf32>
    %216 = arith.addf %212, %215 : vector<1x6x6xf32>
    %217 = vector.extract_strided_slice %206 {offsets = [0, 0, 2], sizes = [1, 6, 6], strides = [1, 1, 1]} : vector<1x6x8xf32> to vector<1x6x6xf32>
    %cst_59 = arith.constant 3.000000e+00 : f32
    %218 = vector.broadcast %cst_59 : f32 to vector<1x6x6xf32>
    %219 = arith.mulf %218, %217 : vector<1x6x6xf32>
    %220 = arith.addf %216, %219 : vector<1x6x6xf32>
    %221 = arith.mulf %181, %181 : vector<1x6x6xf32>
    %222 = arith.mulf %192, %192 : vector<1x6x6xf32>
    %223 = arith.addf %221, %222 : vector<1x6x6xf32>
    %224 = math.sqrt %223 : vector<1x6x6xf32>
    %225 = arith.mulf %209, %209 : vector<1x6x6xf32>
    %226 = arith.mulf %220, %220 : vector<1x6x6xf32>
    %227 = arith.addf %225, %226 : vector<1x6x6xf32>
    %228 = math.sqrt %227 : vector<1x6x6xf32>
    %229 = arith.subf %224, %228 : vector<1x6x6xf32>
    %230 = math.absf %229 : vector<1x6x6xf32>
    %cst_60 = arith.constant dense<0.000000e+00> : vector<1xf32>
    %231 = vector.multi_reduction <add>, %230, %cst_60 [1, 2] : vector<1x6x6xf32> to vector<1xf32>
    %cst_61 = arith.constant 0.027777778 : f32
    %232 = vector.broadcast %cst_61 : f32 to vector<1xf32>
    %233 = arith.mulf %231, %232 : vector<1xf32>
    %234 = arith.addf %152, %233 : vector<1xf32>
    %235 = vector.shape_cast %234 : vector<1xf32> to vector<1x1x1xf32>
    %c0_62 = arith.constant 0 : index
    %c0_63 = arith.constant 0 : index
    %c0_64 = arith.constant 0 : index
    %236 = vector.load %arg7[%c0_62, %c0_63, %c0_64] : memref<1x1x1xf32, #tpu.memory_space<vmem>>, vector<1x1x1xf32>
    tpu.vector_store %arg7[%c0_62, %c0_63, %c0_64], %235 {strides = array<i32>} : memref<1x1x1xf32, #tpu.memory_space<vmem>>, vector<1x1x1xf32>,
    return
  }
  func.func @transform_0(%arg0: i32) -> (i32, i32, i32) {
    %c0_i32 = arith.constant 0 : i32
    %c0_i32_0 = arith.constant 0 : i32
    %c0_i32_1 = arith.constant 0 : i32
    return %arg0, %c0_i32, %c0_i32_0 : i32, i32, i32
  }
  func.func @transform_1(%arg0: i32) -> (i32, i32, i32) {
    %c0_i32 = arith.constant 0 : i32
    %c0_i32_0 = arith.constant 0 : i32
    %c0_i32_1 = arith.constant 0 : i32
    return %arg0, %c0_i32, %c0_i32_0 : i32, i32, i32
  }
  func.func @transform_2(%arg0: i32) -> (i32, i32) {
    %c0_i32 = arith.constant 0 : i32
    %c0_i32_0 = arith.constant 0 : i32
    %c0_i32_1 = arith.constant 0 : i32
    return %c0_i32, %c0_i32_0 : i32, i32
  }
  func.func @transform_3(%arg0: i32) -> (i32, i32) {
    %c0_i32 = arith.constant 0 : i32
    %c0_i32_0 = arith.constant 0 : i32
    %c0_i32_1 = arith.constant 0 : i32
    return %c0_i32, %c0_i32_0 : i32, i32
  }
  func.func @transform_4(%arg0: i32) -> (i32, i32) {
    %c0_i32 = arith.constant 0 : i32
    %c0_i32_0 = arith.constant 0 : i32
    %c0_i32_1 = arith.constant 0 : i32
    return %c0_i32, %c0_i32_0 : i32, i32
  }
  func.func @transform_5(%arg0: i32) -> (i32, i32) {
    %c0_i32 = arith.constant 0 : i32
    %c0_i32_0 = arith.constant 0 : i32
    %c0_i32_1 = arith.constant 0 : i32
    return %c0_i32, %c0_i32_0 : i32, i32
  }
  func.func @transform_6(%arg0: i32) -> (i32, i32, i32) {
    %c0_i32 = arith.constant 0 : i32
    %c0_i32_0 = arith.constant 0 : i32
    %c0_i32_1 = arith.constant 0 : i32
    return %arg0, %c0_i32, %c0_i32_0 : i32, i32, i32
  }
}

</mosaic_0001>

<llo_original>
// kernel: mage_loss.1
$region0: #{mage_loss.1}
  #allocation0 [shape = 'u32[]', space=smem, size = 0x4, offset = 0x4, fixed_abs, tag = 'smem constant byte address 0x4 - core index']
  #allocation1 [shape = 'u32[144,128]{1,0:T(1,128)}', space=vmem, size = 0x12000, scoped, tag = 'internal scratch']
  %s0 = inlined_call_operand.hbm [shape: f32[2,32,32], index: 0, kind: input, shape index: {}]
  %s1 = inlined_call_operand.hbm [shape: f32[2,32,32], index: 1, kind: input, shape index: {}]
  %s2 = inlined_call_operand.hbm [shape: f32[16,32], index: 2, kind: input, shape index: {}]
  %s3 = inlined_call_operand.hbm [shape: f32[32,16], index: 3, kind: input, shape index: {}]
  %s4 = inlined_call_operand.hbm [shape: f32[8,16], index: 4, kind: input, shape index: {}]
  %s5 = inlined_call_operand.vmem [shape: f32[16,8], index: 5, kind: input, shape index: {}]
  %s6 = inlined_call_operand.vmem [shape: f32[2,1,1], index: 6, kind: output, shape index: {}]
  %s7 = sld [smem:[#allocation0]]
  $region77: #{mage_loss.1} parent=0
    _
  %s9 = ssub.s32 1, %s7
  %s10 = scalar_select 0, %s9, %s7
  $region1: #{mage_loss.1} parent=0
    #allocation2 [shape = 'u8[32768]{0}', space=vmem, size = 0x8000, scoped, tag = 'input window, operand 0']
    #allocation3 [shape = 's32[2]{0}', space=sflag, size = 0x8, scoped, tag = 'scoped memory for mage_loss.1']
    #allocation4 [shape = 'u8[32768]{0}', space=vmem, size = 0x8000, scoped, tag = 'input window, operand 1']
    #allocation5 [shape = 's32[2]{0}', space=sflag, size = 0x8, scoped, tag = 'scoped memory for mage_loss.1']
    #allocation6 [shape = 'u8[8192]{0}', space=vmem, size = 0x2000, scoped, tag = 'input window, operand 2, single buffered']
    #allocation7 [shape = 'u8[16384]{0}', space=vmem, size = 0x4000, scoped, tag = 'input window, operand 3, single buffered']
    #allocation8 [shape = 's32[1]{0}', space=sflag, size = 0x4, scoped, tag = 'scoped memory for mage_loss.1']
    #allocation9 [shape = 'u8[4096]{0}', space=vmem, size = 0x1000, scoped, tag = 'input window, operand 4, single buffered']
    %11 = vsyncpa [#allocation3], 0
    %s12 = scalar_lea.sflag [#allocation3], 1
    %13 = vsyncpa %s12, 0
    %14 = vsyncpa [#allocation5], 0
    %s15 = scalar_lea.sflag [#allocation5], 1
    %16 = vsyncpa %s15, 0
    %17 = vsyncpa [#allocation8], 0
    loop: start=0, step=1, limit=4
    $region2: #{mage_loss.1} parent=1 // loop_pre_header
      _
    $region3: #{mage_loss.1} parent=1 // loop_header
      %s19 = sphi 0, %s23
      %p20 = scmp.ge.s32.totalorder %s19, 4
      %s29 = sphi 0, %s31
      %s32 = sphi 0, %s29
      %s33 = sphi 0, %s32
      %s49 = sphi 0, %s33
      %s55 = sphi 0, %s57
      %s58 = sphi 0, %s55
      %s59 = sphi 0, %s58
      %s75 = sphi 0, %s59
      %s79 = sphi 0, %s79
      %s81 = sphi 0, %s79
      %s82 = sphi 0, %s81
      %s96 = sphi 0, %s82
      %s100 = sphi 0, %s100
      %s102 = sphi 0, %s100
      %s103 = sphi 0, %s102
      %s117 = sphi 0, %s103
      %s121 = sphi 0, %s121
      %s123 = sphi 0, %s121
      %s124 = sphi 0, %s123
      %s138 = sphi 0, %s124
      %s142 = sphi 0, %s142
      %s144 = sphi 0, %s142
      %s145 = sphi 0, %s144
      %s159 = sphi 0, %s145
      %s165 = sphi 0, %s167
      %s168 = sphi 0, %s165
      %s169 = sphi 0, %s168
      %s185 = sphi 0, %s169
    $region4: #{mage_loss.1} parent=1 // loop_header_branch
      %22 = sbr.rel (%p20) target = $region8
    $region5: #{mage_loss.1} parent=1 // loop_body
      %s24 = ssub.s32 %s19, 1
      %s25 = ssub.s32 %s19, 2
      %s26 = sadd.s32 %s19, 1
      %s27 = ssub.s32 %s19, %s26
      %p28 = scmp.eq.s32.totalorder %s27, 0
      %s30 = sadd.s32 %s29, 1
      %s31 = scalar_select %p28, %s29, %s30
      %p34 = pneg %p28
      %p35 = scmp.eq.s32.totalorder %s19, 1
      %p36 = por %p34, %p35
      %p37 = scmp.ne.s32.totalorder %s29, %s32
      %p38 = scmp.eq.s32.totalorder %s19, 0
      %p39 = por %p37, %p38
      %p40 = scmp.ne.s32.totalorder %s29, %s32
      %p41 = scmp.eq.s32.totalorder %s24, 1
      %p42 = por %p40, %p41
      %p43 = scmp.ne.s32.totalorder %s32, %s33
      %p44 = scmp.eq.s32.totalorder %s24, 0
      %p45 = por %p43, %p44
      %p46 = scmp.ne.s32.totalorder %s32, %s33
      %p47 = scmp.eq.s32.totalorder %s25, 1
      %p48 = por %p46, %p47
      %p50 = scmp.ne.s32.totalorder %s33, %s49
      %p51 = scmp.eq.s32.totalorder %s25, 0
      %p52 = por %p50, %p51
      %s53 = ssub.s32 %s19, %s26
      %p54 = scmp.eq.s32.totalorder %s53, 0
      %s56 = sadd.s32 %s55, 1
      %s57 = scalar_select %p54, %s55, %s56
      %p60 = pneg %p54
      %p61 = scmp.eq.s32.totalorder %s19, 1
      %p62 = por %p60, %p61
      %p63 = scmp.ne.s32.totalorder %s55, %s58
      %p64 = scmp.eq.s32.totalorder %s19, 0
      %p65 = por %p63, %p64
      %p66 = scmp.ne.s32.totalorder %s55, %s58
      %p67 = scmp.eq.s32.totalorder %s24, 1
      %p68 = por %p66, %p67
      %p69 = scmp.ne.s32.totalorder %s58, %s59
      %p70 = scmp.eq.s32.totalorder %s24, 0
      %p71 = por %p69, %p70
      %p72 = scmp.ne.s32.totalorder %s58, %s59
      %p73 = scmp.eq.s32.totalorder %s25, 1
      %p74 = por %p72, %p73
      %p76 = scmp.ne.s32.totalorder %s59, %s75
      %p77 = scmp.eq.s32.totalorder %s25, 0
      %p78 = por %p76, %p77
      %s80 = sadd.s32 %s79, 1
      %p83 = scmp.eq.s32.totalorder %s19, 1
      %p84 = scmp.ne.s32.totalorder %s79, %s81
      %p85 = scmp.eq.s32.totalorder %s19, 0
      %p86 = por %p84, %p85
      %p87 = scmp.ne.s32.totalorder %s79, %s81
      %p88 = scmp.eq.s32.totalorder %s24, 1
      %p89 = por %p87, %p88
      %p90 = scmp.ne.s32.totalorder %s81, %s82
      %p91 = scmp.eq.s32.totalorder %s24, 0
      %p92 = por %p90, %p91
      %p93 = scmp.ne.s32.totalorder %s81, %s82
      %p94 = scmp.eq.s32.totalorder %s25, 1
      %p95 = por %p93, %p94
      %p97 = scmp.ne.s32.totalorder %s82, %s96
      %p98 = scmp.eq.s32.totalorder %s25, 0
      %p99 = por %p97, %p98
      %s101 = sadd.s32 %s100, 1
      %p104 = scmp.eq.s32.totalorder %s19, 1
      %p105 = scmp.ne.s32.totalorder %s100, %s102
      %p106 = scmp.eq.s32.totalorder %s19, 0
      %p107 = por %p105, %p106
      %p108 = scmp.ne.s32.totalorder %s100, %s102
      %p109 = scmp.eq.s32.totalorder %s24, 1
      %p110 = por %p108, %p109
      %p111 = scmp.ne.s32.totalorder %s102, %s103
      %p112 = scmp.eq.s32.totalorder %s24, 0
      %p113 = por %p111, %p112
      %p114 = scmp.ne.s32.totalorder %s102, %s103
      %p115 = scmp.eq.s32.totalorder %s25, 1
      %p116 = por %p114, %p115
      %p118 = scmp.ne.s32.totalorder %s103, %s117
      %p119 = scmp.eq.s32.totalorder %s25, 0
      %p120 = por %p118, %p119
      %s122 = sadd.s32 %s121, 1
      %p125 = scmp.eq.s32.totalorder %s19, 1
      %p126 = scmp.ne.s32.totalorder %s121, %s123
      %p127 = scmp.eq.s32.totalorder %s19, 0
      %p128 = por %p126, %p127
      %p129 = scmp.ne.s32.totalorder %s121, %s123
      %p130 = scmp.eq.s32.totalorder %s24, 1
      %p131 = por %p129, %p130
      %p132 = scmp.ne.s32.totalorder %s123, %s124
      %p133 = scmp.eq.s32.totalorder %s24, 0
      %p134 = por %p132, %p133
      %p135 = scmp.ne.s32.totalorder %s123, %s124
      %p136 = scmp.eq.s32.totalorder %s25, 1
      %p137 = por %p135, %p136
      %p139 = scmp.ne.s32.totalorder %s124, %s138
      %p140 = scmp.eq.s32.totalorder %s25, 0
      %p141 = por %p139, %p140
      %s143 = sadd.s32 %s142, 1
      %p146 = scmp.eq.s32.totalorder %s19, 1
      %p147 = scmp.ne.s32.totalorder %s142, %s144
      %p148 = scmp.eq.s32.totalorder %s19, 0
      %p149 = por %p147, %p148
      %p150 = scmp.ne.s32.totalorder %s142, %s144
      %p151 = scmp.eq.s32.totalorder %s24, 1
      %p152 = por %p150, %p151
      %p153 = scmp.ne.s32.totalorder %s144, %s145
      %p154 = scmp.eq.s32.totalorder %s24, 0
      %p155 = por %p153, %p154
      %p156 = scmp.ne.s32.totalorder %s144, %s145
      %p157 = scmp.eq.s32.totalorder %s25, 1
      %p158 = por %p156, %p157
      %p160 = scmp.ne.s32.totalorder %s145, %s159
      %p161 = scmp.eq.s32.totalorder %s25, 0
      %p162 = por %p160, %p161
      %s163 = ssub.s32 %s19, %s26
      %p164 = scmp.eq.s32.totalorder %s163, 0
      %s166 = sadd.s32 %s165, 1
      %s167 = scalar_select %p164, %s165, %s166
      %p170 = pneg %p164
      %p171 = scmp.eq.s32.totalorder %s19, 1
      %p172 = por %p170, %p171
      %p173 = scmp.ne.s32.totalorder %s165, %s168
      %p174 = scmp.eq.s32.totalorder %s19, 0
      %p175 = por %p173, %p174
      %p176 = scmp.ne.s32.totalorder %s165, %s168
      %p177 = scmp.eq.s32.totalorder %s24, 1
      %p178 = por %p176, %p177
      %p179 = scmp.ne.s32.totalorder %s168, %s169
      %p180 = scmp.eq.s32.totalorder %s24, 0
      %p181 = por %p179, %p180
      %p182 = scmp.ne.s32.totalorder %s168, %s169
      %p183 = scmp.eq.s32.totalorder %s25, 1
      %p184 = por %p182, %p183
      %p186 = scmp.ne.s32.totalorder %s169, %s185
      %p187 = scmp.eq.s32.totalorder %s25, 0
      %p188 = por %p186, %p187
      %p189 = scmp.le.s32.totalorder 1, %s19
      %p190 = scmp.lt.s32.totalorder %s19, 3
      %p191 = pnand %p189, %p190
      %p192 = pneg %p191
      // Predicated region
      $region9: #{mage_loss.1} parent=5 // pred_check
        _
      $region10: #{mage_loss.1} parent=5 // pred_check_branch
        %194 = sbr.rel (%p191) target = $region12
      $region11: #{mage_loss.1} parent=5 // pred_region
        %s195 = ssub.s32 %s19, 1
        // Predicated region
        $region13: #{mage_loss.1} parent=11 // pred_check
          %p196 = pneg %p92
        $region14: #{mage_loss.1} parent=11 // pred_check_branch
          %198 = sbr.rel (%p196) target = $region16
        $region15: #{mage_loss.1} parent=11 // pred_region
          %s200 = ssub.s32 256, 256
          %201 = vsyncadd [#allocation5], %s200
          %s202 = sshll.u32 [#allocation6], 4
          %s203 = int_to_ptr.vmem [resolvable:$true] %s202
          %208 = dma.hbm_to_vmem [thread:$0]  %s2, 256, %s203, [#allocation5], 128, 128, 8
        $region16: #{mage_loss.1} parent=11 // pred_fallthru
          _
        // Predicated region
        $region17: #{mage_loss.1} parent=11 // pred_check
          %p209 = pneg %p113
        $region18: #{mage_loss.1} parent=11 // pred_check_branch
          %211 = sbr.rel (%p209) target = $region20
        $region19: #{mage_loss.1} parent=11 // pred_region
          %s213 = ssub.s32 512, 512
          %214 = vsyncadd [#allocation8], %s213
          %s215 = sshll.u32 [#allocation7], 4
          %s216 = int_to_ptr.vmem [resolvable:$true] %s215
          %221 = dma.hbm_to_vmem [thread:$0]  %s3, 512, %s216, [#allocation8], 128, 128, 8
        $region20: #{mage_loss.1} parent=11 // pred_fallthru
          _
        // Predicated region
        $region21: #{mage_loss.1} parent=11 // pred_check
          %p222 = pneg %p134
        $region22: #{mage_loss.1} parent=11 // pred_check_branch
          %224 = sbr.rel (%p222) target = $region24
        $region23: #{mage_loss.1} parent=11 // pred_region
          %s226 = ssub.s32 128, 128
          %227 = vsyncadd [#allocation8], %s226
          %s229 = sshll.u32 [#allocation9], 4
          %s230 = int_to_ptr.vmem [resolvable:$true] %s229
          %232 = dma.hbm_to_vmem [thread:$0]  %s4, 128, %s230, [#allocation8]
        $region24: #{mage_loss.1} parent=11 // pred_fallthru
          _
        // Predicated region
        $region25: #{mage_loss.1} parent=11 // pred_check
          %p233 = pneg %p155
        $region26: #{mage_loss.1} parent=11 // pred_check_branch
          %235 = sbr.rel (%p233) target = $region28
        $region27: #{mage_loss.1} parent=11 // pred_region
          _
        $region28: #{mage_loss.1} parent=11 // pred_fallthru
          _
      $region12: #{mage_loss.1} parent=5 // pred_fallthru
        _
      %p236 = scmp.lt.s32.totalorder %s19, 2
      // Predicated region
      $region29: #{mage_loss.1} parent=5 // pred_check
        %p237 = pneg %p236
      $region30: #{mage_loss.1} parent=5 // pred_check_branch
        %239 = sbr.rel (%p237) target = $region32
      $region31: #{mage_loss.1} parent=5 // pred_region
        // Predicated region
        $region33: #{mage_loss.1} parent=31 // pred_check
          %p240 = pneg %p39
        $region34: #{mage_loss.1} parent=31 // pred_check_branch
          %242 = sbr.rel (%p240) target = $region36
        $region35: #{mage_loss.1} parent=31 // pred_region
          %s243 = sand.u32 %s29, 1
          %s244 = scalar_lea.sflag [#allocation3], %s243
          %s245 = sand.u32 %s29, 1
          %s246 = smul.addr %s245, 32
          %s247 = scalar_lea.vmem [#allocation2], %s246
          %s249 = ssub.s32 512, 512
          %250 = vsyncadd %s244, %s249
          %s251 = smul.addr %s19, 4
          %s252 = smul.addr %s251, 128
          %s253 = scalar_lea.hbm %s0, %s252
          %s254 = sshll.u32 %s247, 4
          %s255 = int_to_ptr.vmem [resolvable:$true] %s254
          %260 = dma.hbm_to_vmem [thread:$0]  %s253, 512, %s255, %s244, 128, 128, 8
        $region36: #{mage_loss.1} parent=31 // pred_fallthru
          _
        // Predicated region
        $region37: #{mage_loss.1} parent=31 // pred_check
          %p261 = pneg %p65
        $region38: #{mage_loss.1} parent=31 // pred_check_branch
          %263 = sbr.rel (%p261) target = $region40
        $region39: #{mage_loss.1} parent=31 // pred_region
          %s264 = sand.u32 %s19, 1
          %s265 = scalar_lea.sflag [#allocation5], %s264
          %s266 = sand.u32 %s55, 1
          %s267 = smul.addr %s266, 32
          %s268 = scalar_lea.vmem [#allocation4], %s267
          %s270 = ssub.s32 512, 512
          %271 = vsyncadd %s265, %s270
          %s272 = smul.addr %s19, 4
          %s273 = smul.addr %s272, 128
          %s274 = scalar_lea.hbm %s1, %s273
          %s275 = sshll.u32 %s268, 4
          %s276 = int_to_ptr.vmem [resolvable:$true] %s275
          %281 = dma.hbm_to_vmem [thread:$0]  %s274, 512, %s276, %s265, 128, 128, 8
        $region40: #{mage_loss.1} parent=31 // pred_fallthru
          _
      $region32: #{mage_loss.1} parent=5 // pred_fallthru
        _
      %p282 = scmp.le.s32.totalorder 1, %s19
      %p283 = scmp.lt.s32.totalorder %s19, 3
      %p284 = pnand %p282, %p283
      %p285 = pneg %p284
      // Predicated region
      $region41: #{mage_loss.1} parent=5 // pred_check
        _
      $region42: #{mage_loss.1} parent=5 // pred_check_branch
        %287 = sbr.rel (%p284) target = $region44
      $region43: #{mage_loss.1} parent=5 // pred_region
        %s288 = ssub.s32 %s19, 1
        %s289 = sand.u32 %s32, 1
        %s290 = scalar_lea.sflag [#allocation3], %s289
        %s291 = sand.u32 %s32, 1
        %s292 = smul.addr %s291, 32
        %s293 = scalar_lea.vmem [#allocation2], %s292
        // Predicated region
        $region45: #{mage_loss.1} parent=43 // pred_check
          %p294 = pneg %p45
        $region46: #{mage_loss.1} parent=43 // pred_check_branch
          %296 = sbr.rel (%p294) target = $region48
        $region47: #{mage_loss.1} parent=43 // pred_region
          %297 = dma.done %s290, 512
        $region48: #{mage_loss.1} parent=43 // pred_fallthru
          _
        %s298 = sand.u32 %s24, 1
        %s299 = scalar_lea.sflag [#allocation5], %s298
        %s300 = sand.u32 %s58, 1
        %s301 = smul.addr %s300, 32
        %s302 = scalar_lea.vmem [#allocation4], %s301
        // Predicated region
        $region49: #{mage_loss.1} parent=43 // pred_check
          %p303 = pneg %p71
        $region50: #{mage_loss.1} parent=43 // pred_check_branch
          %305 = sbr.rel (%p303) target = $region52
        $region51: #{mage_loss.1} parent=43 // pred_region
          %306 = dma.done %s299, 512
        $region52: #{mage_loss.1} parent=43 // pred_fallthru
          _
        // Predicated region
        $region53: #{mage_loss.1} parent=43 // pred_check
          %p307 = pneg %p92
        $region54: #{mage_loss.1} parent=43 // pred_check_branch
          %309 = sbr.rel (%p307) target = $region56
        $region55: #{mage_loss.1} parent=43 // pred_region
          %310 = dma.done [#allocation5], 256
        $region56: #{mage_loss.1} parent=43 // pred_fallthru
          _
        // Predicated region
        $region57: #{mage_loss.1} parent=43 // pred_check
          %p311 = pneg %p113
        $region58: #{mage_loss.1} parent=43 // pred_check_branch
          %313 = sbr.rel (%p311) target = $region60
        $region59: #{mage_loss.1} parent=43 // pred_region
          %314 = dma.done [#allocation8], 512
        $region60: #{mage_loss.1} parent=43 // pred_fallthru
          _
        // Predicated region
        $region61: #{mage_loss.1} parent=43 // pred_check
          %p315 = pneg %p134
        $region62: #{mage_loss.1} parent=43 // pred_check_branch
          %317 = sbr.rel (%p315) target = $region64
        $region63: #{mage_loss.1} parent=43 // pred_region
          %318 = dma.done [#allocation8], 128
        $region64: #{mage_loss.1} parent=43 // pred_fallthru
          _
        %s319 = sand.u32 %s32, 1
        %s320 = scalar_lea.sflag [#allocation3], %s319
        %s321 = sand.u32 %s32, 1
        %s322 = smul.addr %s321, 32
        %s323 = scalar_lea.vmem [#allocation2], %s322
        %p324 = pneg %p45
        %p325 = pneg %p42
        %s326 = sand.u32 %s24, 1
        %s327 = scalar_lea.sflag [#allocation5], %s326
        %s328 = sand.u32 %s58, 1
        %s329 = smul.addr %s328, 32
        %s330 = scalar_lea.vmem [#allocation4], %s329
        %p331 = pneg %p71
        %p332 = pneg %p68
        %p333 = pneg %p92
        %p334 = pneg %p89
        %p335 = pneg %p113
        %p336 = pneg %p110
        %p337 = pneg %p134
        %p338 = pneg %p131
        %p339 = pneg %p155
        %p340 = pneg %p152
        %p341 = pneg %p181
        %p342 = pneg %p178
        %p343 = scmp.lt.s32.totalorder %s24, 1
        %s344 = scalar_select %p343, %s24, 1
        %s345 = scalar_lea.vmem %s6, %s344
        %p346 = scmp.lt.s32.totalorder %s24, 1
        %s347 = scalar_select %p346, %s24, 1
        %s348 = scalar_lea.vmem %s6, %s347
        %v349 = vld [vmem:[%s293] sm:$0xff]
        %v350 = vld [vmem:[%s293 + $0x8] sm:$0xff]
        %v351 = vld [vmem:[%s293 + $0x10] sm:$0xff]
        %v352 = vld [vmem:[%s293 + $0x18] sm:$0xff]
        %v353 = vld [vmem:[%s302] sm:$0xff]
        %v354 = vld [vmem:[%s302 + $0x8] sm:$0xff]
        %v355 = vld [vmem:[%s302 + $0x10] sm:$0xff]
        %v356 = vld [vmem:[%s302 + $0x18] sm:$0xff]
        %v357 = vmul.f32 %v349, 3.0
        %v358 = vmul.f32 %v350, 3.0
        %v359 = vmul.f32 %v351, 3.0
        %v360 = vmul.f32 %v352, 3.0
        %v361 = vmul.f32 %v349, 10.0
        %v362 = vmul.f32 %v350, 10.0
        %v363 = vmul.f32 %v351, 10.0
        %v364 = vmul.f32 %v352, 10.0
        %vm369 = vcmask 1046528
        %v370 = vrot.slane %v361, 1
        %v371 = vrot.slane %v362, 1
        %v372 = vsel %vm369, %v370, %v371
        %v373 = vrot.slane %v363, 1
        %v374 = vsel %vm369, %v371, %v373
        %v375 = vrot.slane %v364, 1
        %v376 = vsel %vm369, %v373, %v375
        %v381 = vadd.f32 %v357, %v372
        %v382 = vadd.f32 %v358, %v374
        %v383 = vadd.f32 %v359, %v376
        %v384 = vadd.f32 %v360, %v375
        %vm389 = vcmask 1045504
        %v390 = vrot.slane %v357, 2
        %v391 = vrot.slane %v358, 2
        %v392 = vsel %vm389, %v390, %v391
        %v393 = vrot.slane %v359, 2
        %v394 = vsel %vm389, %v391, %v393
        %v395 = vrot.slane %v360, 2
        %v396 = vsel %vm389, %v393, %v395
        %v401 = vadd.f32 %v381, %v392
        %v402 = vadd.f32 %v382, %v394
        %v403 = vadd.f32 %v383, %v396
        %v404 = vadd.f32 %v384, %v395
        %v409 = vrot.slane %v349, 2
        %v410 = vrot.slane %v350, 2
        %v411 = vsel %vm389, %v409, %v410
        %v412 = vrot.slane %v351, 2
        %v413 = vsel %vm389, %v410, %v412
        %v414 = vrot.slane %v352, 2
        %v415 = vsel %vm389, %v412, %v414
        %v420 = vsub.f32 %v349, %v411
        %v421 = vsub.f32 %v350, %v413
        %v422 = vsub.f32 %v351, %v415
        %v423 = vsub.f32 %v352, %v414
        %428 = vrot.lane.b32.xlu0 %v401, 126
        %v429 = vpop.permute.xlu0 %428
        %430 = vrot.lane.b32.xlu0 %v402, 126
        %v431 = vpop.permute.xlu0 %430
        %432 = vrot.lane.b32.xlu0 %v403, 126
        %v433 = vpop.permute.xlu0 %432
        %434 = vrot.lane.b32.xlu0 %v404, 126
        %v435 = vpop.permute.xlu0 %434
        %v440 = vsub.f32 %v401, %v429
        %v441 = vsub.f32 %v402, %v431
        %v442 = vsub.f32 %v403, %v433
        %v443 = vsub.f32 %v404, %v435
        %v444 = vmul.f32 %v420, 3.0
        %v445 = vmul.f32 %v421, 3.0
        %v446 = vmul.f32 %v422, 3.0
        %v447 = vmul.f32 %v423, 3.0
        %v448 = vmul.f32 %v420, 10.0
        %v449 = vmul.f32 %v421, 10.0
        %v450 = vmul.f32 %v422, 10.0
        %v451 = vmul.f32 %v423, 10.0
        %456 = vrot.lane.b32.xlu0 %v448, 127
        %v457 = vpop.permute.xlu0 %456
        %458 = vrot.lane.b32.xlu0 %v449, 127
        %v459 = vpop.permute.xlu0 %458
        %460 = vrot.lane.b32.xlu0 %v450, 127
        %v461 = vpop.permute.xlu0 %460
        %462 = vrot.lane.b32.xlu0 %v451, 127
        %v463 = vpop.permute.xlu0 %462
        %v468 = vadd.f32 %v444, %v457
        %v469 = vadd.f32 %v445, %v459
        %v470 = vadd.f32 %v446, %v461
        %v471 = vadd.f32 %v447, %v463
        %476 = vrot.lane.b32.xlu0 %v444, 126
        %v477 = vpop.permute.xlu0 %476
        %478 = vrot.lane.b32.xlu0 %v445, 126
        %v479 = vpop.permute.xlu0 %478
        %480 = vrot.lane.b32.xlu0 %v446, 126
        %v481 = vpop.permute.xlu0 %480
        %482 = vrot.lane.b32.xlu0 %v447, 126
        %v483 = vpop.permute.xlu0 %482
        %v488 = vadd.f32 %v468, %v477
        %v489 = vadd.f32 %v469, %v479
        %v490 = vadd.f32 %v470, %v481
        %v491 = vadd.f32 %v471, %v483
        %v492 = vmul.f32 %v353, 3.0
        %v493 = vmul.f32 %v354, 3.0
        %v494 = vmul.f32 %v355, 3.0
        %v495 = vmul.f32 %v356, 3.0
        %v496 = vmul.f32 %v353, 10.0
        %v497 = vmul.f32 %v354, 10.0
        %v498 = vmul.f32 %v355, 10.0
        %v499 = vmul.f32 %v356, 10.0
        %v504 = vrot.slane %v496, 1
        %v505 = vrot.slane %v497, 1
        %v506 = vsel %vm369, %v504, %v505
        %v507 = vrot.slane %v498, 1
        %v508 = vsel %vm369, %v505, %v507
        %v509 = vrot.slane %v499, 1
        %v510 = vsel %vm369, %v507, %v509
        %v515 = vadd.f32 %v492, %v506
        %v516 = vadd.f32 %v493, %v508
        %v517 = vadd.f32 %v494, %v510
        %v518 = vadd.f32 %v495, %v509
        %v523 = vrot.slane %v492, 2
        %v524 = vrot.slane %v493, 2
        %v525 = vsel %vm389, %v523, %v524
        %v526 = vrot.slane %v494, 2
        %v527 = vsel %vm389, %v524, %v526
        %v528 = vrot.slane %v495, 2
        %v529 = vsel %vm389, %v526, %v528
        %v534 = vadd.f32 %v515, %v525
        %v535 = vadd.f32 %v516, %v527
        %v536 = vadd.f32 %v517, %v529
        %v537 = vadd.f32 %v518, %v528
        %v542 = vrot.slane %v353, 2
        %v543 = vrot.slane %v354, 2
        %v544 = vsel %vm389, %v542, %v543
        %v545 = vrot.slane %v355, 2
        %v546 = vsel %vm389, %v543, %v545
        %v547 = vrot.slane %v356, 2
        %v548 = vsel %vm389, %v545, %v547
        %v553 = vsub.f32 %v353, %v544
        %v554 = vsub.f32 %v354, %v546
        %v555 = vsub.f32 %v355, %v548
        %v556 = vsub.f32 %v356, %v547
        %561 = vrot.lane.b32.xlu0 %v534, 126
        %v562 = vpop.permute.xlu0 %561
        %563 = vrot.lane.b32.xlu0 %v535, 126
        %v564 = vpop.permute.xlu0 %563
        %565 = vrot.lane.b32.xlu0 %v536, 126
        %v566 = vpop.permute.xlu0 %565
        %567 = vrot.lane.b32.xlu0 %v537, 126
        %v568 = vpop.permute.xlu0 %567
        %v573 = vsub.f32 %v534, %v562
        %v574 = vsub.f32 %v535, %v564
        %v575 = vsub.f32 %v536, %v566
        %v576 = vsub.f32 %v537, %v568
        %v577 = vmul.f32 %v553, 3.0
        %v578 = vmul.f32 %v554, 3.0
        %v579 = vmul.f32 %v555, 3.0
        %v580 = vmul.f32 %v556, 3.0
        %v581 = vmul.f32 %v553, 10.0
        %v582 = vmul.f32 %v554, 10.0
        %v583 = vmul.f32 %v555, 10.0
        %v584 = vmul.f32 %v556, 10.0
        %589 = vrot.lane.b32.xlu0 %v581, 127
        %v590 = vpop.permute.xlu0 %589
        %591 = vrot.lane.b32.xlu0 %v582, 127
        %v592 = vpop.permute.xlu0 %591
        %593 = vrot.lane.b32.xlu0 %v583, 127
        %v594 = vpop.permute.xlu0 %593
        %595 = vrot.lane.b32.xlu0 %v584, 127
        %v596 = vpop.permute.xlu0 %595
        %v601 = vadd.f32 %v577, %v590
        %v602 = vadd.f32 %v578, %v592
        %v603 = vadd.f32 %v579, %v594
        %v604 = vadd.f32 %v580, %v596
        %609 = vrot.lane.b32.xlu0 %v577, 126
        %v610 = vpop.permute.xlu0 %609
        %611 = vrot.lane.b32.xlu0 %v578, 126
        %v612 = vpop.permute.xlu0 %611
        %613 = vrot.lane.b32.xlu0 %v579, 126
        %v614 = vpop.permute.xlu0 %613
        %615 = vrot.lane.b32.xlu0 %v580, 126
        %v616 = vpop.permute.xlu0 %615
        %v621 = vadd.f32 %v601, %v610
        %v622 = vadd.f32 %v602, %v612
        %v623 = vadd.f32 %v603, %v614
        %v624 = vadd.f32 %v604, %v616
        %v625 = vmul.f32 %v440, %v440
        %v626 = vmul.f32 %v441, %v441
        %v627 = vmul.f32 %v442, %v442
        %v628 = vmul.f32 %v443, %v443
        %v629 = vmul.f32 %v488, %v488
        %v630 = vmul.f32 %v489, %v489
        %v631 = vmul.f32 %v490, %v490
        %v632 = vmul.f32 %v491, %v491
        %v633 = vadd.f32 %v625, %v629
        %v634 = vadd.f32 %v626, %v630
        %v635 = vadd.f32 %v627, %v631
        %v636 = vadd.f32 %v628, %v632
        %v637 = vrsqrt.pop %v633
        %v638 = vmul.f32 %v633, %v637
        %vm639 = vcmp.eq.f32.partialorder %v633, inf
        %v640 = vsel %vm639, %v633, %v638
        %vm641 = vcmp.eq.f32.partialorder %v633, 0.0
        %v642 = vand.u32 %v633, 2147483648
        %v643 = vsel %vm641, %v642, %v640
        %v644 = vrsqrt.pop %v634
        %v645 = vmul.f32 %v634, %v644
        %vm646 = vcmp.eq.f32.partialorder %v634, inf
        %v647 = vsel %vm646, %v634, %v645
        %vm648 = vcmp.eq.f32.partialorder %v634, 0.0
        %v649 = vand.u32 %v634, 2147483648
        %v650 = vsel %vm648, %v649, %v647
        %v651 = vrsqrt.pop %v635
        %v652 = vmul.f32 %v635, %v651
        %vm653 = vcmp.eq.f32.partialorder %v635, inf
        %v654 = vsel %vm653, %v635, %v652
        %vm655 = vcmp.eq.f32.partialorder %v635, 0.0
        %v656 = vand.u32 %v635, 2147483648
        %v657 = vsel %vm655, %v656, %v654
        %v658 = vrsqrt.pop %v636
        %v659 = vmul.f32 %v636, %v658
        %vm660 = vcmp.eq.f32.partialorder %v636, inf
        %v661 = vsel %vm660, %v636, %v659
        %vm662 = vcmp.eq.f32.partialorder %v636, 0.0
        %v663 = vand.u32 %v636, 2147483648
        %v664 = vsel %vm662, %v663, %v661
        %v665 = vmul.f32 %v573, %v573
        %v666 = vmul.f32 %v574, %v574
        %v667 = vmul.f32 %v575, %v575
        %v668 = vmul.f32 %v576, %v576
        %v669 = vmul.f32 %v621, %v621
        %v670 = vmul.f32 %v622, %v622
        %v671 = vmul.f32 %v623, %v623
        %v672 = vmul.f32 %v624, %v624
        %v673 = vadd.f32 %v665, %v669
        %v674 = vadd.f32 %v666, %v670
        %v675 = vadd.f32 %v667, %v671
        %v676 = vadd.f32 %v668, %v672
        %v677 = vrsqrt.pop %v673
        %v678 = vmul.f32 %v673, %v677
        %vm679 = vcmp.eq.f32.partialorder %v673, inf
        %v680 = vsel %vm679, %v673, %v678
        %vm681 = vcmp.eq.f32.partialorder %v673, 0.0
        %v682 = vand.u32 %v673, 2147483648
        %v683 = vsel %vm681, %v682, %v680
        %v684 = vrsqrt.pop %v674
        %v685 = vmul.f32 %v674, %v684
        %vm686 = vcmp.eq.f32.partialorder %v674, inf
        %v687 = vsel %vm686, %v674, %v685
        %vm688 = vcmp.eq.f32.partialorder %v674, 0.0
        %v689 = vand.u32 %v674, 2147483648
        %v690 = vsel %vm688, %v689, %v687
        %v691 = vrsqrt.pop %v675
        %v692 = vmul.f32 %v675, %v691
        %vm693 = vcmp.eq.f32.partialorder %v675, inf
        %v694 = vsel %vm693, %v675, %v692
        %vm695 = vcmp.eq.f32.partialorder %v675, 0.0
        %v696 = vand.u32 %v675, 2147483648
        %v697 = vsel %vm695, %v696, %v694
        %v698 = vrsqrt.pop %v676
        %v699 = vmul.f32 %v676, %v698
        %vm700 = vcmp.eq.f32.partialorder %v676, inf
        %v701 = vsel %vm700, %v676, %v699
        %vm702 = vcmp.eq.f32.partialorder %v676, 0.0
        %v703 = vand.u32 %v676, 2147483648
        %v704 = vsel %vm702, %v703, %v701
        %v705 = vsub.f32 %v643, %v683
        %v706 = vsub.f32 %v650, %v690
        %v707 = vsub.f32 %v657, %v697
        %v708 = vsub.f32 %v664, %v704
        %v709 = vand.u32 2147483647, %v705
        %v710 = vand.u32 2147483647, %v706
        %v711 = vand.u32 2147483647, %v707
        %v712 = vand.u32 2147483647, %v708
        %vm713 = vcmask 244736
        %v714 = vsel %vm713, %v709, 0.0
        %v715 = vsel %vm713, %v710, 0.0
        %v716 = vadd.f32 %v714, %v715
        %v717 = vsel %vm713, %v711, 0.0
        %v718 = vadd.f32 %v716, %v717
        %vm719 = vcmask 242688
        %v720 = vsel %vm719, %v712, 0.0
        %v721 = vadd.f32 %v718, %v720
        %722 = vadd.xlane.f32.xlu0 %v721
        %v723 = vpop.xlane.xlu0 %722
        %v724 = vrot.slane %v723, 4
        %v725 = vadd.f32 %v723, %v724
        %v726 = vrot.slane %v725, 2
        %v727 = vadd.f32 %v725, %v726
        %v728 = vrot.slane %v727, 1
        %v729 = vadd.f32 %v727, %v728
        %v730 = vmul.f32 %v729, 0.0011111111
        %v731 = vld [vmem:[#allocation6] sm:$0xff]
        %v732 = vld [vmem:[#allocation6 + $0x8] sm:$0xff]
        %v733 = vld [vmem:[#allocation7] sm:$0xff]
        %v734 = vld [vmem:[#allocation7 + $0x8] sm:$0xff]
        %v735 = vld [vmem:[#allocation7 + $0x10] sm:$0xff]
        %v736 = vld [vmem:[#allocation7 + $0x18] sm:$0xff]
        %vm737 = vcmask 261120
        %v738 = vsel %vm737, %v349, 0
        %v740 = vsel %vm737, %v350, 0
        %v742 = vsel %vm737, %v351, 0
        %v744 = vsel %vm737, %v352, 0
        %746 = vmatprep.subr.mxu0 0.0
        %747 = vmatpush1.msra.mxu0 %v733
        %748 = vmatprep.subr.mxu0 0.0
        %749 = vmatpush1.msra.mxu0 %v734
        %750 = vmatprep.subr.mxu0 0.0
        %751 = vmatpush1.msra.mxu0 %v735
        %752 = vmatprep.subr.mxu0 0.0
        %753 = vmatpush1.msra.mxu0 %v736
        %754 = vmatprep.subr.mxu0 0.0
        %755 = vmatpush1.msra.mxu0 0.0
        %756 = vmatprep.subr.mxu0 0.0
        %757 = vmatpush1.msra.mxu0 0.0
        %758 = vmatprep.subr.mxu0 0.0
        %759 = vmatpush1.msra.mxu0 0.0
        %760 = vmatprep.subr.mxu0 0.0
        %761 = vmatpush1.msra.mxu0 0.0
        %762 = vmatprep.subr.mxu0 0.0
        %763 = vmatpush1.msra.mxu0 0.0
        %764 = vmatprep.subr.mxu0 0.0
        %765 = vmatpush1.msra.mxu0 0.0
        %766 = vmatprep.subr.mxu0 0.0
        %767 = vmatpush1.msra.mxu0 0.0
        %768 = vmatprep.subr.mxu0 0.0
        %769 = vmatpush1.msra.mxu0 0.0
        %770 = vmatprep.subr.mxu0 0.0
        %771 = vmatpush1.msra.mxu0 0.0
        %772 = vmatprep.subr.mxu0 0.0
        %773 = vmatpush1.msra.mxu0 0.0
        %774 = vmatprep.subr.mxu0 0.0
        %775 = vmatpush1.msra.mxu0 0.0
        %776 = vmatprep.subr.mxu0 0.0
        %777 = vmatpush1.msra.mxu0 0.0
        %778 = vmatprep.subr.mxu0 0.0
        %779 = vmatpush1.msra.mxu0 0.0
        %780 = vmatprep.subr.mxu0 0.0
        %781 = vmatpush1.msra.mxu0 0.0
        %782 = vmatprep.subr.mxu0 0.0
        %783 = vmatpush1.msra.mxu0 0.0
        %784 = vmatprep.subr.mxu0 0.0
        %785 = vmatpush1.msra.mxu0 0.0
        %786 = vmatprep.subr.mxu0 0.0
        %787 = vmatpush1.msra.mxu0 0.0
        %788 = vmatprep.subr.mxu0 0.0
        %789 = vmatpush1.msra.mxu0 0.0
        %790 = vmatprep.subr.mxu0 0.0
        %791 = vmatpush1.msra.mxu0 0.0
        %792 = vmatprep.subr.mxu0 0.0
        %793 = vmatpush1.msra.mxu0 0.0
        %794 = vmatprep.subr.mxu0 0.0
        %795 = vmatpush1.msra.mxu0 0.0
        %796 = vmatprep.subr.mxu0 0.0
        %797 = vmatpush1.msra.mxu0 0.0
        %798 = vmatprep.subr.mxu0 0.0
        %799 = vmatpush1.msra.mxu0 0.0
        %800 = vmatprep.subr.mxu0 0.0
        %801 = vmatpush1.msra.mxu0 0.0
        %802 = vmatprep.subr.mxu0 0.0
        %803 = vmatpush1.msra.mxu0 0.0
        %804 = vmatprep.subr.mxu0 0.0
        %805 = vmatpush1.msra.mxu0 0.0
        %806 = vmatprep.subr.mxu0 0.0
        %807 = vmatpush1.msra.mxu0 0.0
        %808 = vmatprep.subr.mxu0 0.0
        %809 = vmatpush1.msra.mxu0 0.0
        %810 = vmatprep.mubr.f32.mxu0 0.0
        %811 = vmatmul.mubr.f32.gmra.mrb[0].mxu0 %v738
        %v812 = vpop.f32.mrb[0].mxu0
        %v813 = vadd.f32 0.0, %v812
        %v814 = vpop.f32.mrb[0].mxu0
        %815 = vmatprep.mubr.f32.mxu0 0.0
        %816 = vmatmul.mubr.f32.gmra.mrb[0].mxu0 %v740
        %v817 = vpop.f32.mrb[0].mxu0
        %v818 = vadd.f32 0.0, %v817
        %v819 = vpop.f32.mrb[0].mxu0
        %820 = vmatprep.mubr.f32.mxu0 0.0
        %821 = vmatmul.mubr.f32.gmra.mrb[0].mxu0 %v742
        %v822 = vpop.f32.mrb[0].mxu0
        %v823 = vadd.f32 0.0, %v822
        %v824 = vpop.f32.mrb[0].mxu0
        %825 = vmatprep.mubr.f32.mxu0 0.0
        %826 = vmatmul.mubr.f32.gmra.mrb[0].mxu0 %v744
        %v827 = vpop.f32.mrb[0].mxu0
        %v828 = vadd.f32 0.0, %v827
        %v829 = vpop.f32.mrb[0].mxu0
        %830 = vdwg.mxu0
        %v832 = vsel %vm737, %v731, 0
        %v835 = vsel %vm737, %v732, 0
        %837 = vmatprep.subr.mxu0 0.0
        %838 = vmatpush1.msra.mxu0 %v813
        %839 = vmatprep.subr.mxu0 0.0
        %840 = vmatpush1.msra.mxu0 %v818
        %841 = vmatprep.subr.mxu0 0.0
        %842 = vmatpush1.msra.mxu0 %v823
        %843 = vmatprep.subr.mxu0 0.0
        %844 = vmatpush1.msra.mxu0 %v828
        %845 = vmatprep.subr.mxu0 0.0
        %846 = vmatpush1.msra.mxu0 0.0
        %847 = vmatprep.subr.mxu0 0.0
        %848 = vmatpush1.msra.mxu0 0.0
        %849 = vmatprep.subr.mxu0 0.0
        %850 = vmatpush1.msra.mxu0 0.0
        %851 = vmatprep.subr.mxu0 0.0
        %852 = vmatpush1.msra.mxu0 0.0
        %853 = vmatprep.subr.mxu0 0.0
        %854 = vmatpush1.msra.mxu0 0.0
        %855 = vmatprep.subr.mxu0 0.0
        %856 = vmatpush1.msra.mxu0 0.0
        %857 = vmatprep.subr.mxu0 0.0
        %858 = vmatpush1.msra.mxu0 0.0
        %859 = vmatprep.subr.mxu0 0.0
        %860 = vmatpush1.msra.mxu0 0.0
        %861 = vmatprep.subr.mxu0 0.0
        %862 = vmatpush1.msra.mxu0 0.0
        %863 = vmatprep.subr.mxu0 0.0
        %864 = vmatpush1.msra.mxu0 0.0
        %865 = vmatprep.subr.mxu0 0.0
        %866 = vmatpush1.msra.mxu0 0.0
        %867 = vmatprep.subr.mxu0 0.0
        %868 = vmatpush1.msra.mxu0 0.0
        %869 = vmatprep.subr.mxu0 0.0
        %870 = vmatpush1.msra.mxu0 0.0
        %871 = vmatprep.subr.mxu0 0.0
        %872 = vmatpush1.msra.mxu0 0.0
        %873 = vmatprep.subr.mxu0 0.0
        %874 = vmatpush1.msra.mxu0 0.0
        %875 = vmatprep.subr.mxu0 0.0
        %876 = vmatpush1.msra.mxu0 0.0
        %877 = vmatprep.subr.mxu0 0.0
        %878 = vmatpush1.msra.mxu0 0.0
        %879 = vmatprep.subr.mxu0 0.0
        %880 = vmatpush1.msra.mxu0 0.0
        %881 = vmatprep.subr.mxu0 0.0
        %882 = vmatpush1.msra.mxu0 0.0
        %883 = vmatprep.subr.mxu0 0.0
        %884 = vmatpush1.msra.mxu0 0.0
        %885 = vmatprep.subr.mxu0 0.0
        %886 = vmatpush1.msra.mxu0 0.0
        %887 = vmatprep.subr.mxu0 0.0
        %888 = vmatpush1.msra.mxu0 0.0
        %889 = vmatprep.subr.mxu0 0.0
        %890 = vmatpush1.msra.mxu0 0.0
        %891 = vmatprep.subr.mxu0 0.0
        %892 = vmatpush1.msra.mxu0 0.0
        %893 = vmatprep.subr.mxu0 0.0
        %894 = vmatpush1.msra.mxu0 0.0
        %895 = vmatprep.subr.mxu0 0.0
        %896 = vmatpush1.msra.mxu0 0.0
        %897 = vmatprep.subr.mxu0 0.0
        %898 = vmatpush1.msra.mxu0 0.0
        %899 = vmatprep.subr.mxu0 0.0
        %900 = vmatpush1.msra.mxu0 0.0
        %901 = vmatprep.mubr.f32.mxu0 0.0
        %902 = vmatmul.mubr.f32.gmra.mrb[0].mxu0 %v832
        %v903 = vpop.f32.mrb[0].mxu0
        %v904 = vadd.f32 0.0, %v903
        %v905 = vpop.f32.mrb[0].mxu0
        %906 = vmatprep.mubr.f32.mxu0 0.0
        %907 = vmatmul.mubr.f32.gmra.mrb[0].mxu0 %v835
        %v908 = vpop.f32.mrb[0].mxu0
        %v909 = vadd.f32 0.0, %v908
        %v910 = vpop.f32.mrb[0].mxu0
        %911 = vdwg.mxu0
        %v912 = vsel %vm737, %v353, 0
        %v914 = vsel %vm737, %v354, 0
        %v916 = vsel %vm737, %v355, 0
        %v918 = vsel %vm737, %v356, 0
        %920 = vmatprep.subr.mxu0 0.0
        %921 = vmatpush1.msra.mxu0 %v733
        %922 = vmatprep.subr.mxu0 0.0
        %923 = vmatpush1.msra.mxu0 %v734
        %924 = vmatprep.subr.mxu0 0.0
        %925 = vmatpush1.msra.mxu0 %v735
        %926 = vmatprep.subr.mxu0 0.0
        %927 = vmatpush1.msra.mxu0 %v736
        %928 = vmatprep.subr.mxu0 0.0
        %929 = vmatpush1.msra.mxu0 0.0
        %930 = vmatprep.subr.mxu0 0.0
        %931 = vmatpush1.msra.mxu0 0.0
        %932 = vmatprep.subr.mxu0 0.0
        %933 = vmatpush1.msra.mxu0 0.0
        %934 = vmatprep.subr.mxu0 0.0
        %935 = vmatpush1.msra.mxu0 0.0
        %936 = vmatprep.subr.mxu0 0.0
        %937 = vmatpush1.msra.mxu0 0.0
        %938 = vmatprep.subr.mxu0 0.0
        %939 = vmatpush1.msra.mxu0 0.0
        %940 = vmatprep.subr.mxu0 0.0
        %941 = vmatpush1.msra.mxu0 0.0
        %942 = vmatprep.subr.mxu0 0.0
        %943 = vmatpush1.msra.mxu0 0.0
        %944 = vmatprep.subr.mxu0 0.0
        %945 = vmatpush1.msra.mxu0 0.0
        %946 = vmatprep.subr.mxu0 0.0
        %947 = vmatpush1.msra.mxu0 0.0
        %948 = vmatprep.subr.mxu0 0.0
        %949 = vmatpush1.msra.mxu0 0.0
        %950 = vmatprep.subr.mxu0 0.0
        %951 = vmatpush1.msra.mxu0 0.0
        %952 = vmatprep.subr.mxu0 0.0
        %953 = vmatpush1.msra.mxu0 0.0
        %954 = vmatprep.subr.mxu0 0.0
        %955 = vmatpush1.msra.mxu0 0.0
        %956 = vmatprep.subr.mxu0 0.0
        %957 = vmatpush1.msra.mxu0 0.0
        %958 = vmatprep.subr.mxu0 0.0
        %959 = vmatpush1.msra.mxu0 0.0
        %960 = vmatprep.subr.mxu0 0.0
        %961 = vmatpush1.msra.mxu0 0.0
        %962 = vmatprep.subr.mxu0 0.0
        %963 = vmatpush1.msra.mxu0 0.0
        %964 = vmatprep.subr.mxu0 0.0
        %965 = vmatpush1.msra.mxu0 0.0
        %966 = vmatprep.subr.mxu0 0.0
        %967 = vmatpush1.msra.mxu0 0.0
        %968 = vmatprep.subr.mxu0 0.0
        %969 = vmatpush1.msra.mxu0 0.0
        %970 = vmatprep.subr.mxu0 0.0
        %971 = vmatpush1.msra.mxu0 0.0
        %972 = vmatprep.subr.mxu0 0.0
        %973 = vmatpush1.msra.mxu0 0.0
        %974 = vmatprep.subr.mxu0 0.0
        %975 = vmatpush1.msra.mxu0 0.0
        %976 = vmatprep.subr.mxu0 0.0
        %977 = vmatpush1.msra.mxu0 0.0
        %978 = vmatprep.subr.mxu0 0.0
        %979 = vmatpush1.msra.mxu0 0.0
        %980 = vmatprep.subr.mxu0 0.0
        %981 = vmatpush1.msra.mxu0 0.0
        %982 = vmatprep.subr.mxu0 0.0
        %983 = vmatpush1.msra.mxu0 0.0
        %984 = vmatprep.mubr.f32.mxu0 0.0
        %985 = vmatmul.mubr.f32.gmra.mrb[0].mxu0 %v912
        %v986 = vpop.f32.mrb[0].mxu0
        %v987 = vadd.f32 0.0, %v986
        %v988 = vpop.f32.mrb[0].mxu0
        %989 = vmatprep.mubr.f32.mxu0 0.0
        %990 = vmatmul.mubr.f32.gmra.mrb[0].mxu0 %v914
        %v991 = vpop.f32.mrb[0].mxu0
        %v992 = vadd.f32 0.0, %v991
        %v993 = vpop.f32.mrb[0].mxu0
        %994 = vmatprep.mubr.f32.mxu0 0.0
        %995 = vmatmul.mubr.f32.gmra.mrb[0].mxu0 %v916
        %v996 = vpop.f32.mrb[0].mxu0
        %v997 = vadd.f32 0.0, %v996
        %v998 = vpop.f32.mrb[0].mxu0
        %999 = vmatprep.mubr.f32.mxu0 0.0
        %1000 = vmatmul.mubr.f32.gmra.mrb[0].mxu0 %v918
        %v1001 = vpop.f32.mrb[0].mxu0
        %v1002 = vadd.f32 0.0, %v1001
        %v1003 = vpop.f32.mrb[0].mxu0
        %1004 = vdwg.mxu0
        %1005 = vmatprep.subr.mxu0 0.0
        %1006 = vmatpush1.msra.mxu0 %v987
        %1007 = vmatprep.subr.mxu0 0.0
        %1008 = vmatpush1.msra.mxu0 %v992
        %1009 = vmatprep.subr.mxu0 0.0
        %1010 = vmatpush1.msra.mxu0 %v997
        %1011 = vmatprep.subr.mxu0 0.0
        %1012 = vmatpush1.msra.mxu0 %v1002
        %1013 = vmatprep.subr.mxu0 0.0
        %1014 = vmatpush1.msra.mxu0 0.0
        %1015 = vmatprep.subr.mxu0 0.0
        %1016 = vmatpush1.msra.mxu0 0.0
        %1017 = vmatprep.subr.mxu0 0.0
        %1018 = vmatpush1.msra.mxu0 0.0
        %1019 = vmatprep.subr.mxu0 0.0
        %1020 = vmatpush1.msra.mxu0 0.0
        %1021 = vmatprep.subr.mxu0 0.0
        %1022 = vmatpush1.msra.mxu0 0.0
        %1023 = vmatprep.subr.mxu0 0.0
        %1024 = vmatpush1.msra.mxu0 0.0
        %1025 = vmatprep.subr.mxu0 0.0
        %1026 = vmatpush1.msra.mxu0 0.0
        %1027 = vmatprep.subr.mxu0 0.0
        %1028 = vmatpush1.msra.mxu0 0.0
        %1029 = vmatprep.subr.mxu0 0.0
        %1030 = vmatpush1.msra.mxu0 0.0
        %1031 = vmatprep.subr.mxu0 0.0
        %1032 = vmatpush1.msra.mxu0 0.0
        %1033 = vmatprep.subr.mxu0 0.0
        %1034 = vmatpush1.msra.mxu0 0.0
        %1035 = vmatprep.subr.mxu0 0.0
        %1036 = vmatpush1.msra.mxu0 0.0
        %1037 = vmatprep.subr.mxu0 0.0
        %1038 = vmatpush1.msra.mxu0 0.0
        %1039 = vmatprep.subr.mxu0 0.0
        %1040 = vmatpush1.msra.mxu0 0.0
        %1041 = vmatprep.subr.mxu0 0.0
        %1042 = vmatpush1.msra.mxu0 0.0
        %1043 = vmatprep.subr.mxu0 0.0
        %1044 = vmatpush1.msra.mxu0 0.0
        %1045 = vmatprep.subr.mxu0 0.0
        %1046 = vmatpush1.msra.mxu0 0.0
        %1047 = vmatprep.subr.mxu0 0.0
        %1048 = vmatpush1.msra.mxu0 0.0
        %1049 = vmatprep.subr.mxu0 0.0
        %1050 = vmatpush1.msra.mxu0 0.0
        %1051 = vmatprep.subr.mxu0 0.0
        %1052 = vmatpush1.msra.mxu0 0.0
        %1053 = vmatprep.subr.mxu0 0.0
        %1054 = vmatpush1.msra.mxu0 0.0
        %1055 = vmatprep.subr.mxu0 0.0
        %1056 = vmatpush1.msra.mxu0 0.0
        %1057 = vmatprep.subr.mxu0 0.0
        %1058 = vmatpush1.msra.mxu0 0.0
        %1059 = vmatprep.subr.mxu0 0.0
        %1060 = vmatpush1.msra.mxu0 0.0
        %1061 = vmatprep.subr.mxu0 0.0
        %1062 = vmatpush1.msra.mxu0 0.0
        %1063 = vmatprep.subr.mxu0 0.0
        %1064 = vmatpush1.msra.mxu0 0.0
        %1065 = vmatprep.subr.mxu0 0.0
        %1066 = vmatpush1.msra.mxu0 0.0
        %1067 = vmatprep.subr.mxu0 0.0
        %1068 = vmatpush1.msra.mxu0 0.0
        %1069 = vmatprep.mubr.f32.mxu0 0.0
        %1070 = vmatmul.mubr.f32.gmra.mrb[0].mxu0 %v832
        %v1071 = vpop.f32.mrb[0].mxu0
        %v1072 = vadd.f32 0.0, %v1071
        %v1073 = vpop.f32.mrb[0].mxu0
        %1074 = vmatprep.mubr.f32.mxu0 0.0
        %1075 = vmatmul.mubr.f32.gmra.mrb[0].mxu0 %v835
        %v1076 = vpop.f32.mrb[0].mxu0
        %v1077 = vadd.f32 0.0, %v1076
        %v1078 = vpop.f32.mrb[0].mxu0
        %1079 = vdwg.mxu0
        %v1080 = vmul.f32 %v904, 3.0
        %v1081 = vmul.f32 %v909, 3.0
        %v1082 = vmul.f32 %v904, 10.0
        %v1083 = vmul.f32 %v909, 10.0
        %v1086 = vrot.slane %v1082, 1
        %v1087 = vrot.slane %v1083, 1
        %v1088 = vsel %vm369, %v1086, %v1087
        %v1091 = vadd.f32 %v1080, %v1088
        %v1092 = vadd.f32 %v1081, %v1087
        %v1095 = vrot.slane %v1080, 2
        %v1096 = vrot.slane %v1081, 2
        %v1097 = vsel %vm389, %v1095, %v1096
        %v1100 = vadd.f32 %v1091, %v1097
        %v1101 = vadd.f32 %v1092, %v1096
        %v1104 = vrot.slane %v904, 2
        %v1105 = vrot.slane %v909, 2
        %v1106 = vsel %vm389, %v1104, %v1105
        %v1109 = vsub.f32 %v904, %v1106
        %v1110 = vsub.f32 %v909, %v1105
        %1113 = vrot.lane.b32.xlu0 %v1100, 126
        %v1114 = vpop.permute.xlu0 %1113
        %1115 = vrot.lane.b32.xlu0 %v1101, 126
        %v1116 = vpop.permute.xlu0 %1115
        %v1119 = vsub.f32 %v1100, %v1114
        %v1120 = vsub.f32 %v1101, %v1116
        %v1121 = vmul.f32 %v1109, 3.0
        %v1122 = vmul.f32 %v1110, 3.0
        %v1123 = vmul.f32 %v1109, 10.0
        %v1124 = vmul.f32 %v1110, 10.0
        %1127 = vrot.lane.b32.xlu0 %v1123, 127
        %v1128 = vpop.permute.xlu0 %1127
        %1129 = vrot.lane.b32.xlu0 %v1124, 127
        %v1130 = vpop.permute.xlu0 %1129
        %v1133 = vadd.f32 %v1121, %v1128
        %v1134 = vadd.f32 %v1122, %v1130
        %1137 = vrot.lane.b32.xlu0 %v1121, 126
        %v1138 = vpop.permute.xlu0 %1137
        %1139 = vrot.lane.b32.xlu0 %v1122, 126
        %v1140 = vpop.permute.xlu0 %1139
        %v1143 = vadd.f32 %v1133, %v1138
        %v1144 = vadd.f32 %v1134, %v1140
        %v1145 = vmul.f32 %v1072, 3.0
        %v1146 = vmul.f32 %v1077, 3.0
        %v1147 = vmul.f32 %v1072, 10.0
        %v1148 = vmul.f32 %v1077, 10.0
        %v1151 = vrot.slane %v1147, 1
        %v1152 = vrot.slane %v1148, 1
        %v1153 = vsel %vm369, %v1151, %v1152
        %v1156 = vadd.f32 %v1145, %v1153
        %v1157 = vadd.f32 %v1146, %v1152
        %v1160 = vrot.slane %v1145, 2
        %v1161 = vrot.slane %v1146, 2
        %v1162 = vsel %vm389, %v1160, %v1161
        %v1165 = vadd.f32 %v1156, %v1162
        %v1166 = vadd.f32 %v1157, %v1161
        %v1169 = vrot.slane %v1072, 2
        %v1170 = vrot.slane %v1077, 2
        %v1171 = vsel %vm389, %v1169, %v1170
        %v1174 = vsub.f32 %v1072, %v1171
        %v1175 = vsub.f32 %v1077, %v1170
        %1178 = vrot.lane.b32.xlu0 %v1165, 126
        %v1179 = vpop.permute.xlu0 %1178
        %1180 = vrot.lane.b32.xlu0 %v1166, 126
        %v1181 = vpop.permute.xlu0 %1180
        %v1184 = vsub.f32 %v1165, %v1179
        %v1185 = vsub.f32 %v1166, %v1181
        %v1186 = vmul.f32 %v1174, 3.0
        %v1187 = vmul.f32 %v1175, 3.0
        %v1188 = vmul.f32 %v1174, 10.0
        %v1189 = vmul.f32 %v1175, 10.0
        %1192 = vrot.lane.b32.xlu0 %v1188, 127
        %v1193 = vpop.permute.xlu0 %1192
        %1194 = vrot.lane.b32.xlu0 %v1189, 127
        %v1195 = vpop.permute.xlu0 %1194
        %v1198 = vadd.f32 %v1186, %v1193
        %v1199 = vadd.f32 %v1187, %v1195
        %1202 = vrot.lane.b32.xlu0 %v1186, 126
        %v1203 = vpop.permute.xlu0 %1202
        %1204 = vrot.lane.b32.xlu0 %v1187, 126
        %v1205 = vpop.permute.xlu0 %1204
        %v1208 = vadd.f32 %v1198, %v1203
        %v1209 = vadd.f32 %v1199, %v1205
        %v1210 = vmul.f32 %v1119, %v1119
        %v1211 = vmul.f32 %v1120, %v1120
        %v1212 = vmul.f32 %v1143, %v1143
        %v1213 = vmul.f32 %v1144, %v1144
        %v1214 = vadd.f32 %v1210, %v1212
        %v1215 = vadd.f32 %v1211, %v1213
        %v1216 = vrsqrt.pop %v1214
        %v1217 = vmul.f32 %v1214, %v1216
        %vm1218 = vcmp.eq.f32.partialorder %v1214, inf
        %v1219 = vsel %vm1218, %v1214, %v1217
        %vm1220 = vcmp.eq.f32.partialorder %v1214, 0.0
        %v1221 = vand.u32 %v1214, 2147483648
        %v1222 = vsel %vm1220, %v1221, %v1219
        %v1223 = vrsqrt.pop %v1215
        %v1224 = vmul.f32 %v1215, %v1223
        %vm1225 = vcmp.eq.f32.partialorder %v1215, inf
        %v1226 = vsel %vm1225, %v1215, %v1224
        %vm1227 = vcmp.eq.f32.partialorder %v1215, 0.0
        %v1228 = vand.u32 %v1215, 2147483648
        %v1229 = vsel %vm1227, %v1228, %v1226
        %v1230 = vmul.f32 %v1184, %v1184
        %v1231 = vmul.f32 %v1185, %v1185
        %v1232 = vmul.f32 %v1208, %v1208
        %v1233 = vmul.f32 %v1209, %v1209
        %v1234 = vadd.f32 %v1230, %v1232
        %v1235 = vadd.f32 %v1231, %v1233
        %v1236 = vrsqrt.pop %v1234
        %v1237 = vmul.f32 %v1234, %v1236
        %vm1238 = vcmp.eq.f32.partialorder %v1234, inf
        %v1239 = vsel %vm1238, %v1234, %v1237
        %vm1240 = vcmp.eq.f32.partialorder %v1234, 0.0
        %v1241 = vand.u32 %v1234, 2147483648
        %v1242 = vsel %vm1240, %v1241, %v1239
        %v1243 = vrsqrt.pop %v1235
        %v1244 = vmul.f32 %v1235, %v1243
        %vm1245 = vcmp.eq.f32.partialorder %v1235, inf
        %v1246 = vsel %vm1245, %v1235, %v1244
        %vm1247 = vcmp.eq.f32.partialorder %v1235, 0.0
        %v1248 = vand.u32 %v1235, 2147483648
        %v1249 = vsel %vm1247, %v1248, %v1246
        %v1250 = vsub.f32 %v1222, %v1242
        %v1251 = vsub.f32 %v1229, %v1249
        %v1252 = vand.u32 2147483647, %v1250
        %v1253 = vand.u32 2147483647, %v1251
        %vm1254 = vcmask 113664
        %v1255 = vsel %vm1254, %v1252, 0.0
        %vm1256 = vcmask 111616
        %v1257 = vsel %vm1256, %v1253, 0.0
        %v1258 = vadd.f32 %v1255, %v1257
        %1259 = vadd.xlane.f32.xlu0 %v1258
        %v1260 = vpop.xlane.xlu0 %1259
        %v1261 = vrot.slane %v1260, 4
        %v1262 = vadd.f32 %v1260, %v1261
        %v1263 = vrot.slane %v1262, 2
        %v1264 = vadd.f32 %v1262, %v1263
        %v1265 = vrot.slane %v1264, 1
        %v1266 = vadd.f32 %v1264, %v1265
        %v1267 = vmul.f32 %v1266, 0.0051020407
        %v1268 = vadd.f32 %v730, %v1267
        %v1269 = vld [vmem:[#allocation9] sm:$0xff]
        %v1270 = vld [vmem:[%s5] sm:$0xff]
        %v1271 = vld [vmem:[%s5 + $0x8] sm:$0xff]
        %vm1272 = vcmask 130048
        %v1273 = vsel %vm1272, %v904, 0
        %v1275 = vsel %vm1272, %v909, 0
        %1277 = vmatprep.subr.mxu0 0.0
        %1278 = vmatpush1.msra.mxu0 %v1270
        %1279 = vmatprep.subr.mxu0 0.0
        %1280 = vmatpush1.msra.mxu0 %v1271
        %1281 = vmatprep.subr.mxu0 0.0
        %1282 = vmatpush1.msra.mxu0 0.0
        %1283 = vmatprep.subr.mxu0 0.0
        %1284 = vmatpush1.msra.mxu0 0.0
        %1285 = vmatprep.subr.mxu0 0.0
        %1286 = vmatpush1.msra.mxu0 0.0
        %1287 = vmatprep.subr.mxu0 0.0
        %1288 = vmatpush1.msra.mxu0 0.0
        %1289 = vmatprep.subr.mxu0 0.0
        %1290 = vmatpush1.msra.mxu0 0.0
        %1291 = vmatprep.subr.mxu0 0.0
        %1292 = vmatpush1.msra.mxu0 0.0
        %1293 = vmatprep.subr.mxu0 0.0
        %1294 = vmatpush1.msra.mxu0 0.0
        %1295 = vmatprep.subr.mxu0 0.0
        %1296 = vmatpush1.msra.mxu0 0.0
        %1297 = vmatprep.subr.mxu0 0.0
        %1298 = vmatpush1.msra.mxu0 0.0
        %1299 = vmatprep.subr.mxu0 0.0
        %1300 = vmatpush1.msra.mxu0 0.0
        %1301 = vmatprep.subr.mxu0 0.0
        %1302 = vmatpush1.msra.mxu0 0.0
        %1303 = vmatprep.subr.mxu0 0.0
        %1304 = vmatpush1.msra.mxu0 0.0
        %1305 = vmatprep.subr.mxu0 0.0
        %1306 = vmatpush1.msra.mxu0 0.0
        %1307 = vmatprep.subr.mxu0 0.0
        %1308 = vmatpush1.msra.mxu0 0.0
        %1309 = vmatprep.subr.mxu0 0.0
        %1310 = vmatpush1.msra.mxu0 0.0
        %1311 = vmatprep.subr.mxu0 0.0
        %1312 = vmatpush1.msra.mxu0 0.0
        %1313 = vmatprep.subr.mxu0 0.0
        %1314 = vmatpush1.msra.mxu0 0.0
        %1315 = vmatprep.subr.mxu0 0.0
        %1316 = vmatpush1.msra.mxu0 0.0
        %1317 = vmatprep.subr.mxu0 0.0
        %1318 = vmatpush1.msra.mxu0 0.0
        %1319 = vmatprep.subr.mxu0 0.0
        %1320 = vmatpush1.msra.mxu0 0.0
        %1321 = vmatprep.subr.mxu0 0.0
        %1322 = vmatpush1.msra.mxu0 0.0
        %1323 = vmatprep.subr.mxu0 0.0
        %1324 = vmatpush1.msra.mxu0 0.0
        %1325 = vmatprep.subr.mxu0 0.0
        %1326 = vmatpush1.msra.mxu0 0.0
        %1327 = vmatprep.subr.mxu0 0.0
        %1328 = vmatpush1.msra.mxu0 0.0
        %1329 = vmatprep.subr.mxu0 0.0
        %1330 = vmatpush1.msra.mxu0 0.0
        %1331 = vmatprep.subr.mxu0 0.0
        %1332 = vmatpush1.msra.mxu0 0.0
        %1333 = vmatprep.subr.mxu0 0.0
        %1334 = vmatpush1.msra.mxu0 0.0
        %1335 = vmatprep.subr.mxu0 0.0
        %1336 = vmatpush1.msra.mxu0 0.0
        %1337 = vmatprep.subr.mxu0 0.0
        %1338 = vmatpush1.msra.mxu0 0.0
        %1339 = vmatprep.subr.mxu0 0.0
        %1340 = vmatpush1.msra.mxu0 0.0
        %1341 = vmatprep.mubr.f32.mxu0 0.0
        %1342 = vmatmul.mubr.f32.gmra.mrb[0].mxu0 %v1273
        %v1343 = vpop.f32.mrb[0].mxu0
        %v1344 = vadd.f32 0.0, %v1343
        %v1345 = vpop.f32.mrb[0].mxu0
        %1346 = vmatprep.mubr.f32.mxu0 0.0
        %1347 = vmatmul.mubr.f32.gmra.mrb[0].mxu0 %v1275
        %v1348 = vpop.f32.mrb[0].mxu0
        %v1349 = vadd.f32 0.0, %v1348
        %v1350 = vpop.f32.mrb[0].mxu0
        %1351 = vdwg.mxu0
        %v1353 = vsel %vm1272, %v1269, 0
        %1355 = vmatprep.subr.mxu0 0.0
        %1356 = vmatpush1.msra.mxu0 %v1344
        %1357 = vmatprep.subr.mxu0 0.0
        %1358 = vmatpush1.msra.mxu0 %v1349
        %1359 = vmatprep.subr.mxu0 0.0
        %1360 = vmatpush1.msra.mxu0 0.0
        %1361 = vmatprep.subr.mxu0 0.0
        %1362 = vmatpush1.msra.mxu0 0.0
        %1363 = vmatprep.subr.mxu0 0.0
        %1364 = vmatpush1.msra.mxu0 0.0
        %1365 = vmatprep.subr.mxu0 0.0
        %1366 = vmatpush1.msra.mxu0 0.0
        %1367 = vmatprep.subr.mxu0 0.0
        %1368 = vmatpush1.msra.mxu0 0.0
        %1369 = vmatprep.subr.mxu0 0.0
        %1370 = vmatpush1.msra.mxu0 0.0
        %1371 = vmatprep.subr.mxu0 0.0
        %1372 = vmatpush1.msra.mxu0 0.0
        %1373 = vmatprep.subr.mxu0 0.0
        %1374 = vmatpush1.msra.mxu0 0.0
        %1375 = vmatprep.subr.mxu0 0.0
        %1376 = vmatpush1.msra.mxu0 0.0
        %1377 = vmatprep.subr.mxu0 0.0
        %1378 = vmatpush1.msra.mxu0 0.0
        %1379 = vmatprep.subr.mxu0 0.0
        %1380 = vmatpush1.msra.mxu0 0.0
        %1381 = vmatprep.subr.mxu0 0.0
        %1382 = vmatpush1.msra.mxu0 0.0
        %1383 = vmatprep.subr.mxu0 0.0
        %1384 = vmatpush1.msra.mxu0 0.0
        %1385 = vmatprep.subr.mxu0 0.0
        %1386 = vmatpush1.msra.mxu0 0.0
        %1387 = vmatprep.subr.mxu0 0.0
        %1388 = vmatpush1.msra.mxu0 0.0
        %1389 = vmatprep.subr.mxu0 0.0
        %1390 = vmatpush1.msra.mxu0 0.0
        %1391 = vmatprep.subr.mxu0 0.0
        %1392 = vmatpush1.msra.mxu0 0.0
        %1393 = vmatprep.subr.mxu0 0.0
        %1394 = vmatpush1.msra.mxu0 0.0
        %1395 = vmatprep.subr.mxu0 0.0
        %1396 = vmatpush1.msra.mxu0 0.0
        %1397 = vmatprep.subr.mxu0 0.0
        %1398 = vmatpush1.msra.mxu0 0.0
        %1399 = vmatprep.subr.mxu0 0.0
        %1400 = vmatpush1.msra.mxu0 0.0
        %1401 = vmatprep.subr.mxu0 0.0
        %1402 = vmatpush1.msra.mxu0 0.0
        %1403 = vmatprep.subr.mxu0 0.0
        %1404 = vmatpush1.msra.mxu0 0.0
        %1405 = vmatprep.subr.mxu0 0.0
        %1406 = vmatpush1.msra.mxu0 0.0
        %1407 = vmatprep.subr.mxu0 0.0
        %1408 = vmatpush1.msra.mxu0 0.0
        %1409 = vmatprep.subr.mxu0 0.0
        %1410 = vmatpush1.msra.mxu0 0.0
        %1411 = vmatprep.subr.mxu0 0.0
        %1412 = vmatpush1.msra.mxu0 0.0
        %1413 = vmatprep.subr.mxu0 0.0
        %1414 = vmatpush1.msra.mxu0 0.0
        %1415 = vmatprep.subr.mxu0 0.0
        %1416 = vmatpush1.msra.mxu0 0.0
        %1417 = vmatprep.subr.mxu0 0.0
        %1418 = vmatpush1.msra.mxu0 0.0
        %1419 = vmatprep.mubr.f32.mxu0 0.0
        %1420 = vmatmul.mubr.f32.gmra.mrb[0].mxu0 %v1353
        %v1421 = vpop.f32.mrb[0].mxu0
        %v1422 = vadd.f32 0.0, %v1421
        %v1423 = vpop.f32.mrb[0].mxu0
        %1424 = vdwg.mxu0
        %v1425 = vsel %vm1272, %v1072, 0
        %v1427 = vsel %vm1272, %v1077, 0
        %1429 = vmatprep.subr.mxu0 0.0
        %1430 = vmatpush1.msra.mxu0 %v1270
        %1431 = vmatprep.subr.mxu0 0.0
        %1432 = vmatpush1.msra.mxu0 %v1271
        %1433 = vmatprep.subr.mxu0 0.0
        %1434 = vmatpush1.msra.mxu0 0.0
        %1435 = vmatprep.subr.mxu0 0.0
        %1436 = vmatpush1.msra.mxu0 0.0
        %1437 = vmatprep.subr.mxu0 0.0
        %1438 = vmatpush1.msra.mxu0 0.0
        %1439 = vmatprep.subr.mxu0 0.0
        %1440 = vmatpush1.msra.mxu0 0.0
        %1441 = vmatprep.subr.mxu0 0.0
        %1442 = vmatpush1.msra.mxu0 0.0
        %1443 = vmatprep.subr.mxu0 0.0
        %1444 = vmatpush1.msra.mxu0 0.0
        %1445 = vmatprep.subr.mxu0 0.0
        %1446 = vmatpush1.msra.mxu0 0.0
        %1447 = vmatprep.subr.mxu0 0.0
        %1448 = vmatpush1.msra.mxu0 0.0
        %1449 = vmatprep.subr.mxu0 0.0
        %1450 = vmatpush1.msra.mxu0 0.0
        %1451 = vmatprep.subr.mxu0 0.0
        %1452 = vmatpush1.msra.mxu0 0.0
        %1453 = vmatprep.subr.mxu0 0.0
        %1454 = vmatpush1.msra.mxu0 0.0
        %1455 = vmatprep.subr.mxu0 0.0
        %1456 = vmatpush1.msra.mxu0 0.0
        %1457 = vmatprep.subr.mxu0 0.0
        %1458 = vmatpush1.msra.mxu0 0.0
        %1459 = vmatprep.subr.mxu0 0.0
        %1460 = vmatpush1.msra.mxu0 0.0
        %1461 = vmatprep.subr.mxu0 0.0
        %1462 = vmatpush1.msra.mxu0 0.0
        %1463 = vmatprep.subr.mxu0 0.0
        %1464 = vmatpush1.msra.mxu0 0.0
        %1465 = vmatprep.subr.mxu0 0.0
        %1466 = vmatpush1.msra.mxu0 0.0
        %1467 = vmatprep.subr.mxu0 0.0
        %1468 = vmatpush1.msra.mxu0 0.0
        %1469 = vmatprep.subr.mxu0 0.0
        %1470 = vmatpush1.msra.mxu0 0.0
        %1471 = vmatprep.subr.mxu0 0.0
        %1472 = vmatpush1.msra.mxu0 0.0
        %1473 = vmatprep.subr.mxu0 0.0
        %1474 = vmatpush1.msra.mxu0 0.0
        %1475 = vmatprep.subr.mxu0 0.0
        %1476 = vmatpush1.msra.mxu0 0.0
        %1477 = vmatprep.subr.mxu0 0.0
        %1478 = vmatpush1.msra.mxu0 0.0
        %1479 = vmatprep.subr.mxu0 0.0
        %1480 = vmatpush1.msra.mxu0 0.0
        %1481 = vmatprep.subr.mxu0 0.0
        %1482 = vmatpush1.msra.mxu0 0.0
        %1483 = vmatprep.subr.mxu0 0.0
        %1484 = vmatpush1.msra.mxu0 0.0
        %1485 = vmatprep.subr.mxu0 0.0
        %1486 = vmatpush1.msra.mxu0 0.0
        %1487 = vmatprep.subr.mxu0 0.0
        %1488 = vmatpush1.msra.mxu0 0.0
        %1489 = vmatprep.subr.mxu0 0.0
        %1490 = vmatpush1.msra.mxu0 0.0
        %1491 = vmatprep.subr.mxu0 0.0
        %1492 = vmatpush1.msra.mxu0 0.0
        %1493 = vmatprep.mubr.f32.mxu0 0.0
        %1494 = vmatmul.mubr.f32.gmra.mrb[0].mxu0 %v1425
        %v1495 = vpop.f32.mrb[0].mxu0
        %v1496 = vadd.f32 0.0, %v1495
        %v1497 = vpop.f32.mrb[0].mxu0
        %1498 = vmatprep.mubr.f32.mxu0 0.0
        %1499 = vmatmul.mubr.f32.gmra.mrb[0].mxu0 %v1427
        %v1500 = vpop.f32.mrb[0].mxu0
        %v1501 = vadd.f32 0.0, %v1500
        %v1502 = vpop.f32.mrb[0].mxu0
        %1503 = vdwg.mxu0
        %1504 = vmatprep.subr.mxu0 0.0
        %1505 = vmatpush1.msra.mxu0 %v1496
        %1506 = vmatprep.subr.mxu0 0.0
        %1507 = vmatpush1.msra.mxu0 %v1501
        %1508 = vmatprep.subr.mxu0 0.0
        %1509 = vmatpush1.msra.mxu0 0.0
        %1510 = vmatprep.subr.mxu0 0.0
        %1511 = vmatpush1.msra.mxu0 0.0
        %1512 = vmatprep.subr.mxu0 0.0
        %1513 = vmatpush1.msra.mxu0 0.0
        %1514 = vmatprep.subr.mxu0 0.0
        %1515 = vmatpush1.msra.mxu0 0.0
        %1516 = vmatprep.subr.mxu0 0.0
        %1517 = vmatpush1.msra.mxu0 0.0
        %1518 = vmatprep.subr.mxu0 0.0
        %1519 = vmatpush1.msra.mxu0 0.0
        %1520 = vmatprep.subr.mxu0 0.0
        %1521 = vmatpush1.msra.mxu0 0.0
        %1522 = vmatprep.subr.mxu0 0.0
        %1523 = vmatpush1.msra.mxu0 0.0
        %1524 = vmatprep.subr.mxu0 0.0
        %1525 = vmatpush1.msra.mxu0 0.0
        %1526 = vmatprep.subr.mxu0 0.0
        %1527 = vmatpush1.msra.mxu0 0.0
        %1528 = vmatprep.subr.mxu0 0.0
        %1529 = vmatpush1.msra.mxu0 0.0
        %1530 = vmatprep.subr.mxu0 0.0
        %1531 = vmatpush1.msra.mxu0 0.0
        %1532 = vmatprep.subr.mxu0 0.0
        %1533 = vmatpush1.msra.mxu0 0.0
        %1534 = vmatprep.subr.mxu0 0.0
        %1535 = vmatpush1.msra.mxu0 0.0
        %1536 = vmatprep.subr.mxu0 0.0
        %1537 = vmatpush1.msra.mxu0 0.0
        %1538 = vmatprep.subr.mxu0 0.0
        %1539 = vmatpush1.msra.mxu0 0.0
        %1540 = vmatprep.subr.mxu0 0.0
        %1541 = vmatpush1.msra.mxu0 0.0
        %1542 = vmatprep.subr.mxu0 0.0
        %1543 = vmatpush1.msra.mxu0 0.0
        %1544 = vmatprep.subr.mxu0 0.0
        %1545 = vmatpush1.msra.mxu0 0.0
        %1546 = vmatprep.subr.mxu0 0.0
        %1547 = vmatpush1.msra.mxu0 0.0
        %1548 = vmatprep.subr.mxu0 0.0
        %1549 = vmatpush1.msra.mxu0 0.0
        %1550 = vmatprep.subr.mxu0 0.0
        %1551 = vmatpush1.msra.mxu0 0.0
        %1552 = vmatprep.subr.mxu0 0.0
        %1553 = vmatpush1.msra.mxu0 0.0
        %1554 = vmatprep.subr.mxu0 0.0
        %1555 = vmatpush1.msra.mxu0 0.0
        %1556 = vmatprep.subr.mxu0 0.0
        %1557 = vmatpush1.msra.mxu0 0.0
        %1558 = vmatprep.subr.mxu0 0.0
        %1559 = vmatpush1.msra.mxu0 0.0
        %1560 = vmatprep.subr.mxu0 0.0
        %1561 = vmatpush1.msra.mxu0 0.0
        %1562 = vmatprep.subr.mxu0 0.0
        %1563 = vmatpush1.msra.mxu0 0.0
        %1564 = vmatprep.subr.mxu0 0.0
        %1565 = vmatpush1.msra.mxu0 0.0
        %1566 = vmatprep.subr.mxu0 0.0
        %1567 = vmatpush1.msra.mxu0 0.0
        %1568 = vmatprep.mubr.f32.mxu0 0.0
        %1569 = vmatmul.mubr.f32.gmra.mrb[0].mxu0 %v1353
        %v1570 = vpop.f32.mrb[0].mxu0
        %v1571 = vadd.f32 0.0, %v1570
        %v1572 = vpop.f32.mrb[0].mxu0
        %1573 = vdwg.mxu0
        %v1574 = vmul.f32 %v1422, 3.0
        %v1575 = vmul.f32 %v1422, 10.0
        %v1577 = vrot.slane %v1575, 1
        %v1579 = vadd.f32 %v1574, %v1577
        %v1581 = vrot.slane %v1574, 2
        %v1583 = vadd.f32 %v1579, %v1581
        %v1585 = vrot.slane %v1422, 2
        %v1587 = vsub.f32 %v1422, %v1585
        %1589 = vrot.lane.b32.xlu0 %v1583, 126
        %v1590 = vpop.permute.xlu0 %1589
        %v1592 = vsub.f32 %v1583, %v1590
        %v1593 = vmul.f32 %v1587, 3.0
        %v1594 = vmul.f32 %v1587, 10.0
        %1596 = vrot.lane.b32.xlu0 %v1594, 127
        %v1597 = vpop.permute.xlu0 %1596
        %v1599 = vadd.f32 %v1593, %v1597
        %1601 = vrot.lane.b32.xlu0 %v1593, 126
        %v1602 = vpop.permute.xlu0 %1601
        %v1604 = vadd.f32 %v1599, %v1602
        %v1605 = vmul.f32 %v1571, 3.0
        %v1606 = vmul.f32 %v1571, 10.0
        %v1608 = vrot.slane %v1606, 1
        %v1610 = vadd.f32 %v1605, %v1608
        %v1612 = vrot.slane %v1605, 2
        %v1614 = vadd.f32 %v1610, %v1612
        %v1616 = vrot.slane %v1571, 2
        %v1618 = vsub.f32 %v1571, %v1616
        %1620 = vrot.lane.b32.xlu0 %v1614, 126
        %v1621 = vpop.permute.xlu0 %1620
        %v1623 = vsub.f32 %v1614, %v1621
        %v1624 = vmul.f32 %v1618, 3.0
        %v1625 = vmul.f32 %v1618, 10.0
        %1627 = vrot.lane.b32.xlu0 %v1625, 127
        %v1628 = vpop.permute.xlu0 %1627
        %v1630 = vadd.f32 %v1624, %v1628
        %1632 = vrot.lane.b32.xlu0 %v1624, 126
        %v1633 = vpop.permute.xlu0 %1632
        %v1635 = vadd.f32 %v1630, %v1633
        %v1636 = vmul.f32 %v1592, %v1592
        %v1637 = vmul.f32 %v1604, %v1604
        %v1638 = vadd.f32 %v1636, %v1637
        %v1639 = vrsqrt.pop %v1638
        %v1640 = vmul.f32 %v1638, %v1639
        %vm1641 = vcmp.eq.f32.partialorder %v1638, inf
        %v1642 = vsel %vm1641, %v1638, %v1640
        %vm1643 = vcmp.eq.f32.partialorder %v1638, 0.0
        %v1644 = vand.u32 %v1638, 2147483648
        %v1645 = vsel %vm1643, %v1644, %v1642
        %v1646 = vmul.f32 %v1623, %v1623
        %v1647 = vmul.f32 %v1635, %v1635
        %v1648 = vadd.f32 %v1646, %v1647
        %v1649 = vrsqrt.pop %v1648
        %v1650 = vmul.f32 %v1648, %v1649
        %vm1651 = vcmp.eq.f32.partialorder %v1648, inf
        %v1652 = vsel %vm1651, %v1648, %v1650
        %vm1653 = vcmp.eq.f32.partialorder %v1648, 0.0
        %v1654 = vand.u32 %v1648, 2147483648
        %v1655 = vsel %vm1653, %v1654, %v1652
        %v1656 = vsub.f32 %v1645, %v1655
        %v1657 = vand.u32 2147483647, %v1656
        %vm1658 = vcmask 46080
        %v1659 = vsel %vm1658, %v1657, 0.0
        %1660 = vadd.xlane.f32.xlu0 %v1659
        %v1661 = vpop.xlane.xlu0 %1660
        %v1662 = vrot.slane %v1661, 4
        %v1663 = vadd.f32 %v1661, %v1662
        %v1664 = vrot.slane %v1663, 2
        %v1665 = vadd.f32 %v1663, %v1664
        %v1666 = vrot.slane %v1665, 1
        %v1667 = vadd.f32 %v1665, %v1666
        %v1668 = vmul.f32 %v1667, 0.027777778
        %v1669 = vadd.f32 %v1268, %v1668
        %vm1670 = vcmask 0
        %1671 = vst.msk [vmem:[%s348] sm:$0x1] %vm1670, %v1669
        %p1672 = scmp.lt.s32.totalorder %s24, 1
        %s1673 = scalar_select %p1672, %s24, 1
        %s1674 = scalar_lea.vmem %s6, %s1673
        // Predicated region
        $region65: #{mage_loss.1} parent=43 // pred_check
          %p1675 = pneg %p178
        $region66: #{mage_loss.1} parent=43 // pred_check_branch
          %1677 = sbr.rel (%p1675) target = $region68
        $region67: #{mage_loss.1} parent=43 // pred_region
          _
        $region68: #{mage_loss.1} parent=43 // pred_fallthru
          _
      $region44: #{mage_loss.1} parent=5 // pred_fallthru
        _
      %p1678 = scmp.le.s32.totalorder 2, %s19
      // Predicated region
      $region69: #{mage_loss.1} parent=5 // pred_check
        %p1679 = pneg %p1678
      $region70: #{mage_loss.1} parent=5 // pred_check_branch
        %1681 = sbr.rel (%p1679) target = $region72
      $region71: #{mage_loss.1} parent=5 // pred_region
        %s1682 = ssub.s32 %s19, 2
        // Predicated region
        $region73: #{mage_loss.1} parent=71 // pred_check
          %p1683 = pneg %p184
        $region74: #{mage_loss.1} parent=71 // pred_check_branch
          %1685 = sbr.rel (%p1683) target = $region76
        $region75: #{mage_loss.1} parent=71 // pred_region
          %p1686 = scmp.lt.s32.totalorder %s25, 1
          %s1687 = scalar_select %p1686, %s25, 1
          %s1688 = scalar_lea.vmem %s6, %s1687
        $region76: #{mage_loss.1} parent=71 // pred_fallthru
          _
      $region72: #{mage_loss.1} parent=5 // pred_fallthru
        _
    $region6: #{mage_loss.1} parent=1 // loop_footer
      %s23 = sadd.s32 1, %s19
    $region7: #{mage_loss.1} parent=1 // loop_footer_branch
      %18 = sbr.rel target = $region3
    $region8: #{mage_loss.1} parent=1 // loop_exit
      _
    %1689 = vsyncpa [#allocation3], 1
    %s1690 = scalar_lea.sflag [#allocation3], 1
    %1691 = vsyncpa %s1690, 1
    %1692 = vsyncpa [#allocation5], 1
    %s1693 = scalar_lea.sflag [#allocation5], 1
    %1694 = vsyncpa %s1693, 1
    %1695 = vsyncpa [#allocation8], 1

</llo_original>
